<compile_context>
chip_gen: v5e
topology: v5e:2x2
jax: 0.10.0
libtpu: 0.0.40
codegen_flags: <defaults>
</compile_context>

<pallas_src>
import functools
import numpy as np
import jax
import jax.numpy as jnp
from jax.experimental import pallas as pl
from jax.experimental.pallas import tpu as pltpu


# ----------------------------- fused Pallas kernel --------------------------

def _rapt_seq_kernel(
        x_ref, p_ref, bias_ref,
        fcw_ref, fcb_ref,
        wqk_ref, bqk_ref, wv_ref, bv_ref, wo_ref, bo_ref,
        g1_ref, be1_ref, w1_ref, b1_ref, w2_ref, b2_ref, g2_ref, be2_ref,
        mpw_ref, mpb_ref,
        feat_ref, mp_ref,
        h_scr,
        *, head_num, layer_num):
    """One grid step = one padded sequence of Sp_pad tokens.

    x_ref    : (1, Sp_pad, D) f32   raw tokens of this sequence
    p_ref    : (1, Sp_pad, H) bf16  time (week) embedding
    bias_ref : (1, 1, Sp_pad) f32   additive key-padding bias row (0 / -1e9)
    weights  : bf16 MXU operands stacked over layers, f32 biases / LN params
    feat_ref : (1, 1, H)            token-0 feature (CLS for sp / rc)
    mp_ref   : (1, Sp_pad, pre_n)   masked-prediction logits for every token
    h_scr    : (Sp_pad, H) f32 VMEM scratch carrying the residual stream
    """
    Sp, H = h_scr.shape
    dh = H // head_num
    scale = 1.0 / float(np.sqrt(dh))
    bf16 = jnp.bfloat16

    bias = bias_ref[0]                       # (1, Sp) key-padding bias row
    p = p_ref[0].astype(jnp.float32)         # (Sp, H) time embedding

    def layernorm(z, g, b):
        mu = jnp.mean(z, axis=-1, keepdims=True)
        var = jnp.mean((z - mu) ** 2, axis=-1, keepdims=True)
        return (z - mu) * jax.lax.rsqrt(var + 1e-5) * g + b

    # input projection for this sequence's tokens
    h_scr[...] = jnp.dot(x_ref[0].astype(bf16), fcw_ref[...],
                         preferred_element_type=jnp.float32) + fcb_ref[...]

    # TODO(synk): with production H the per-head dh slices below should be
    # lane-tile aligned (dh multiple of 128) or the Q/K/V layout reorganized;
    # at the toy H=32 everything lives inside one lane tile anyway.
    @pl.loop(0, layer_num)
    def _(l):
        h = h_scr[...]                                               # (Sp, H) f32
        # fused Q|K projection from the time-aware input, V from the plain input
        xp = (h + p).astype(bf16)
        qk = jnp.dot(xp, wqk_ref[l],
                     preferred_element_type=jnp.float32) + bqk_ref[l]   # (Sp, 2H)
        v = jnp.dot(h.astype(bf16), wv_ref[l],
                    preferred_element_type=jnp.float32) + bv_ref[l]     # (Sp, H)

        # per-head attention restricted to this sequence (block-diagonal by
        # construction); only the (Sp, Sp) tile is ever computed.
        ctxs = []
        for hd in range(head_num):
            qh = qk[:, hd * dh:(hd + 1) * dh].astype(bf16)
            kh = qk[:, H + hd * dh:H + (hd + 1) * dh].astype(bf16)
            vh = v[:, hd * dh:(hd + 1) * dh].astype(bf16)
            s = jnp.einsum('qd,kd->qk', qh, kh,
                           preferred_element_type=jnp.float32) * scale + bias
            s = s - jnp.max(s, axis=-1, keepdims=True)
            e = jnp.exp(s)
            attn = e / jnp.sum(e, axis=-1, keepdims=True)
            ctxs.append(jnp.dot(attn.astype(bf16), vh,
                                preferred_element_type=jnp.float32))    # (Sp, dh)
        # fused output projection: single contraction-H matmul for all heads
        ctx = jnp.concatenate(ctxs, axis=-1).astype(bf16)               # (Sp, H)
        ao = jnp.dot(ctx, wo_ref[l],
                     preferred_element_type=jnp.float32) + bo_ref[l]

        # residual + LN1, FFN, residual + LN2 (f32 on the VPU)
        h1 = layernorm(h + ao, g1_ref[l], be1_ref[l])
        f = jnp.dot(h1.astype(bf16), w1_ref[l],
                    preferred_element_type=jnp.float32) + b1_ref[l]
        f = jnp.maximum(f, 0.0)
        f = jnp.dot(f.astype(bf16), w2_ref[l],
                    preferred_element_type=jnp.float32) + b2_ref[l]
        h_scr[...] = layernorm(h1 + f, g2_ref[l], be2_ref[l])

    h = h_scr[...]
    # token-0 feature (CLS for the sp / rc sequences); JAX slices the task rows.
    feat_ref[...] = h[0:1, :][None]
    # masked-prediction head for every token of this sequence (tiny matmul);
    # JAX keeps only the mp-task rows / valid tokens.
    mp_ref[...] = (jnp.dot(h, mpw_ref[...],
                           preferred_element_type=jnp.float32) + mpb_ref[...])[None]


def fused_backbone(params, x_all, p_all, bias_rows):
    """x_all (n_seq, Sp_pad, D) f32, p_all (n_seq, Sp_pad, H) bf16,
    bias_rows (n_seq, 1, Sp_pad) f32 -> (feat0 (n_seq,1,H), mp (n_seq,Sp_pad,pre_n))."""
    n_seq, Sp_pad, _ = x_all.shape
    H = params['fc_w'].shape[1]
    pre_n = params['mp_w'].shape[1]
    layer_num = params['wqk'].shape[0]

    kernel = functools.partial(_rapt_seq_kernel,
                               head_num=params['head_num'],
                               layer_num=layer_num)

    weight_names = ('fc_w', 'fc_b', 'wqk', 'bqk', 'wv', 'bv', 'wo', 'bo',
                    'g1', 'be1', 'w1', 'b1', 'w2', 'b2', 'g2', 'be2',
                    'mp_w', 'mp_b')
    weights = [params[k] for k in weight_names]

    def seq_spec(arr):                       # per-sequence token block
        nd = arr.ndim
        return pl.BlockSpec((1,) + arr.shape[1:],
                            lambda i, nd=nd: (i,) + (0,) * (nd - 1))

    def resident_spec(arr):                  # constant index -> DMA'd once
        nd = arr.ndim
        return pl.BlockSpec(arr.shape, lambda i, nd=nd: (0,) * nd)

    in_specs = [seq_spec(x_all), seq_spec(p_all), seq_spec(bias_rows)]
    in_specs += [resident_spec(w) for w in weights]
    out_specs = (pl.BlockSpec((1, 1, H), lambda i: (i, 0, 0)),
                 pl.BlockSpec((1, Sp_pad, pre_n), lambda i: (i, 0, 0)))

    # TODO(synk): at production sizes (large H / layer_num) stream the stacked
    # layer weights (layer grid axis or manual double-buffered DMA) instead of
    # keeping them fully VMEM-resident, to respect v7x's 64 MiB VMEM.
    return pl.pallas_call(
        kernel,
        out_shape=(jax.ShapeDtypeStruct((n_seq, 1, H), jnp.float32),
                   jax.ShapeDtypeStruct((n_seq, Sp_pad, pre_n), jnp.float32)),
        grid_spec=pltpu.PrefetchScalarGridSpec(
            num_scalar_prefetch=0,
            grid=(n_seq,),
            in_specs=in_specs,
            out_specs=out_specs,
            scratch_shapes=[pltpu.VMEM((Sp_pad, H), jnp.float32)]),
        compiler_params=pltpu.CompilerParams(
            dimension_semantics=("parallel",)),
    )(x_all, p_all, bias_rows, *weights)


# ----------------------------- parameters -----------------------------------

def make_pe_table(max_pos, H):
    pos = np.arange(max_pos)[:, None].astype(np.float32)
    i = np.arange(H)[None, :].astype(np.float32)
    angle = pos / np.power(10000.0, (2.0 * np.floor(i / 2.0)) / H)
    pe = np.zeros((max_pos, H), np.float32)
    pe[:, 0::2] = np.sin(angle[:, 0::2])
    pe[:, 1::2] = np.cos(angle[:, 1::2])
    return jnp.asarray(pe)


def _init_linear(key, fan_in, fan_out):
    k1, k2 = jax.random.split(key)
    bound = 1.0 / float(np.sqrt(fan_in))
    w = jax.random.uniform(k1, (fan_in, fan_out), jnp.float32, -bound, bound)
    b = jax.random.uniform(k2, (fan_out,), jnp.float32, -bound, bound)
    return w, b


def init_params(key, input_dim, hidden_dim, head_num, layer_num, max_len, pre_n):
    H = hidden_dim
    keys = jax.random.split(key, 4 + layer_num)
    params = {}
    params['cls'] = jax.random.normal(keys[0], (input_dim,), jnp.float32)
    fc_w, fc_b = _init_linear(keys[1], input_dim, H)
    params['fc_w'] = fc_w.astype(jnp.bfloat16)           # MXU operand -> bf16
    params['fc_b'] = fc_b.reshape(1, H)
    mp_w, mp_b = _init_linear(keys[2], H, pre_n)
    params['mp_w'], params['mp_b'] = mp_w, mp_b.reshape(1, pre_n)
    rc_w, rc_b = _init_linear(keys[3], H, 1)
    params['rc_w'], params['rc_b'] = rc_w, rc_b.reshape(1, 1)
    params['pe'] = make_pe_table(max_len + 4, H)
    params['head_num'] = head_num

    wqk, bqk, wv, bv, wo, bo = [], [], [], [], [], []
    w1, b1, w2, b2 = [], [], [], []
    g1, be1, g2, be2 = [], [], [], []
    for l in range(layer_num):
        lk = jax.random.split(keys[4 + l], 6)
        wq_, bq_ = _init_linear(lk[0], H, H)
        wk_, bk_ = _init_linear(lk[1], H, H)
        wv_, bv_ = _init_linear(lk[2], H, H)
        wo_, bo_ = _init_linear(lk[3], H, H)
        w1_, b1_ = _init_linear(lk[4], H, H)
        w2_, b2_ = _init_linear(lk[5], H, H)
        wqk.append(jnp.concatenate([wq_, wk_], axis=1))   # fused Q|K: (H, 2H)
        bqk.append(jnp.concatenate([bq_, bk_])[None, :])
        wv.append(wv_); bv.append(bv_[None, :])
        wo.append(wo_); bo.append(bo_[None, :])
        w1.append(w1_); b1.append(b1_[None, :])
        w2.append(w2_); b2.append(b2_[None, :])
        g1.append(jnp.ones((1, H), jnp.float32)); be1.append(jnp.zeros((1, H), jnp.float32))
        g2.append(jnp.ones((1, H), jnp.float32)); be2.append(jnp.zeros((1, H), jnp.float32))

    params['wqk'] = jnp.stack(wqk).astype(jnp.bfloat16)   # (L, H, 2H)
    params['bqk'] = jnp.stack(bqk)                        # (L, 1, 2H)
    params['wv'] = jnp.stack(wv).astype(jnp.bfloat16)
    params['bv'] = jnp.stack(bv)
    params['wo'] = jnp.stack(wo).astype(jnp.bfloat16)
    params['bo'] = jnp.stack(bo)
    params['w1'] = jnp.stack(w1).astype(jnp.bfloat16)
    params['b1'] = jnp.stack(b1)
    params['w2'] = jnp.stack(w2).astype(jnp.bfloat16)
    params['b2'] = jnp.stack(b2)
    params['g1'] = jnp.stack(g1); params['be1'] = jnp.stack(be1)
    params['g2'] = jnp.stack(g2); params['be2'] = jnp.stack(be2)
    return params


# ----------------------------- pretrain forward ------------------------------

def pretrain_forward(params, args, x, maskf, week, key):
    B, S, D = x.shape
    pre_n = args['pre_n']
    Sp = S + 1
    Sp_pad = ((Sp + 7) // 8) * 8                   # sublane-aligned sequence length
    k_mp, k_rc1, k_rc2, k_rc3 = jax.random.split(key, 4)

    cls = params['cls']
    cls_row = jnp.broadcast_to(cls[None, None, :], (B, 1, D))
    li = maskf.sum(-1).astype(jnp.int32) - 1
    last_week = week[jnp.arange(B), li]
    week_pre = jnp.concatenate([(last_week + 1)[:, None], week], axis=1)
    mask_pre = jnp.concatenate([jnp.ones((B, 1), jnp.float32), maskf], axis=1)

    # --- sp: similarity prediction input (mode='pre') ---
    x_sp = jnp.concatenate([cls_row, x], axis=1)                        # (B, S+1, D)

    # --- mp: masked prediction input (mode='s2s') ---
    rnd = jax.random.uniform(k_mp, maskf.shape)
    pre_mask = jnp.where(rnd > args['mask_p'], 0.0, maskf)[:, :, None]  # (B, S, 1)
    y_mp = x[..., :pre_n]
    x_mp = jnp.where(pre_mask == 1.0, 0.0, x) + pre_mask * cls[None, None, :]

    # --- rc: reasonability check input (mode='pre') ---
    coin = jax.random.bernoulli(k_rc1, 0.5, (B,))
    y_rc = coin.astype(jnp.float32)
    # TODO(synk): original uses python `random` with data-dependent counts to shuffle
    # rows; replaced with a deterministic jax.random corruption of valid positions.
    pos_sel = jax.random.bernoulli(k_rc2, 0.75, (B, S)) & (maskf > 0)
    corrupt = coin[:, None] & pos_sel
    src_idx = jax.random.randint(k_rc3, (B, S), 0, B * S)
    repl = x.reshape(B * S, D)[src_idx]
    x_rc = jnp.concatenate([cls_row, jnp.where(corrupt[..., None], repl, x)], axis=1)

    def pad_seq(a):
        pad = Sp_pad - a.shape[1]
        if pad == 0:
            return a
        cfg = [(0, 0), (0, pad)] + [(0, 0)] * (a.ndim - 2)
        return jnp.pad(a, cfg)

    # --- batch the three tasks along the sequence axis; pad every sequence ---
    x_all = jnp.concatenate([pad_seq(x_sp), pad_seq(x_mp), pad_seq(x_rc)], axis=0)
    week_all = jnp.concatenate([pad_seq(week_pre), pad_seq(week), pad_seq(week_pre)], axis=0)
    mask_all = jnp.concatenate([pad_seq(mask_pre), pad_seq(maskf), pad_seq(mask_pre)], axis=0)
    p_all = params['pe'][week_all].astype(jnp.bfloat16)                 # (3B, Sp_pad, H)
    # O(N) key-padding bias rows (the block-diagonal part of the old (N,N) bias
    # is handled structurally by the per-sequence grid).
    bias_rows = jnp.where(mask_all > 0.5, 0.0, -1e9).astype(jnp.float32)[:, None, :]

    feat0, mp_all = fused_backbone(params, x_all.astype(jnp.float32), p_all, bias_rows)
    sp_feat = feat0[:B, 0, :]                                           # (B, H)
    rc_feat = feat0[2 * B:, 0, :]                                       # (B, H)
    mp_pred = mp_all[B:2 * B, :S, :]                                    # (B, S, pre_n)
    rc_logit = rc_feat @ params['rc_w'] + params['rc_b']                # tiny head in JAX

    # --- losses (small reductions, plain JAX glue) ---
    last_x = x[jnp.arange(B), li, :][:, :4]
    dis_x = jnp.sum((last_x[:B // 2] - last_x[B // 2:]) ** 2, axis=1)
    y_sp = (dis_x < 118.0).astype(jnp.float32)
    m_sp = ((dis_x > 1089.0) | (dis_x < 118.0)).astype(jnp.float32)
    dis_f = jnp.sum((sp_feat[:B // 2] - sp_feat[B // 2:]) ** 2, axis=1)
    term = y_sp * dis_f + (1.0 - y_sp) * (args['margin'] - jnp.sqrt(dis_f)) ** 2
    loss_sp = jnp.sum(m_sp * term) / jnp.maximum(jnp.sum(m_sp), 1.0)

    denom = jnp.maximum(jnp.sum(pre_mask), 1.0) * pre_n
    loss_mp = jnp.sum(pre_mask * (mp_pred - y_mp) ** 2) / denom

    y_hat = jnp.clip(jax.nn.sigmoid(rc_logit[:, 0]), 1e-7, 1.0 - 1e-7)
    loss_rc = -jnp.mean(y_rc * jnp.log(y_hat) + (1.0 - y_rc) * jnp.log(1.0 - y_hat))

    losses = dict(sp=loss_sp, mp=loss_mp, rc=loss_rc)
    # args['mode'] == 'stable' -> proportions used as given (no np.random task draw).
    result = {'loss': jnp.float32(0.0)}
    for t, prop in zip(args['task'], args['proportion']):
        if prop == 0:
            result['loss_%s' % t] = jnp.float32(0.0)
        else:
            result['loss_%s' % t] = losses[t]
            result['loss'] = result['loss'] + prop * losses[t]
    return result


# --------------------------------- main --------------------------------------

if __name__ == "__main__":
    args = dict(
        input_dim=8, hidden_dim=32, head_num=4, layer_num=2, max_len=16,
        pre_n=4, mask_p=0.5, margin=1.0, mode='stable',
        task=['sp', 'mp', 'rc'], proportion=[0.4, 0.3, 0.3],
    )
    B, S = 4, 8

    root = jax.random.PRNGKey(0)
    k_param, k_x, k_task = jax.random.split(root, 3)

    params = init_params(k_param, args['input_dim'], args['hidden_dim'],
                         args['head_num'], args['layer_num'],
                         args['max_len'], args['pre_n'])

    x = jax.random.normal(k_x, (B, S, args['input_dim']), jnp.float32)
    lengths = jnp.array([8, 6, 7, 5], jnp.int32)
    maskf = (jnp.arange(S)[None, :] < lengths[:, None]).astype(jnp.float32)
    week = jnp.tile(jnp.arange(S, dtype=jnp.int32)[None, :], (B, 1))

    result = pretrain_forward(params, args, x, maskf, week, k_task)
    jax.block_until_ready(result['loss'])
    for name in ('loss_sp', 'loss_mp', 'loss_rc', 'loss'):
        assert np.isfinite(float(result[name])), name
    print("KERNEL_OK")
</pallas_src>

<mosaic_0001>
module attributes {stable_mosaic.version = 11 : i64} {
  func.func @_rapt_seq_kernel(%arg0: i32, %arg1: memref<1x16x8xf32, #tpu.memory_space<vmem>>, %arg2: memref<1x16x32xbf16, #tpu.memory_space<vmem>>, %arg3: memref<1x1x16xf32, #tpu.memory_space<vmem>>, %arg4: memref<8x32xbf16, #tpu.memory_space<vmem>>, %arg5: memref<1x32xf32, #tpu.memory_space<vmem>>, %arg6: memref<2x32x64xbf16, #tpu.memory_space<vmem>>, %arg7: memref<2x1x64xf32, #tpu.memory_space<vmem>>, %arg8: memref<2x32x32xbf16, #tpu.memory_space<vmem>>, %arg9: memref<2x1x32xf32, #tpu.memory_space<vmem>>, %arg10: memref<2x32x32xbf16, #tpu.memory_space<vmem>>, %arg11: memref<2x1x32xf32, #tpu.memory_space<vmem>>, %arg12: memref<2x1x32xf32, #tpu.memory_space<vmem>>, %arg13: memref<2x1x32xf32, #tpu.memory_space<vmem>>, %arg14: memref<2x32x32xbf16, #tpu.memory_space<vmem>>, %arg15: memref<2x1x32xf32, #tpu.memory_space<vmem>>, %arg16: memref<2x32x32xbf16, #tpu.memory_space<vmem>>, %arg17: memref<2x1x32xf32, #tpu.memory_space<vmem>>, %arg18: memref<2x1x32xf32, #tpu.memory_space<vmem>>, %arg19: memref<2x1x32xf32, #tpu.memory_space<vmem>>, %arg20: memref<32x4xf32, #tpu.memory_space<vmem>>, %arg21: memref<1x4xf32, #tpu.memory_space<vmem>>, %arg22: memref<1x1x32xf32, #tpu.memory_space<vmem>>, %arg23: memref<1x16x4xf32, #tpu.memory_space<vmem>>, %arg24: memref<16x32xf32, #tpu.memory_space<vmem>>) attributes {dimension_semantics = [#tpu.dimension_semantics<parallel>], iteration_bounds = array<i64: 12>, scalar_prefetch = 0 : i64, scratch_operands = 1 : i64, tpu.core_type = #tpu.core_type<tc>, window_params = [{transform_indices = @transform_0, window_bounds = array<i64: 1, 16, 8>}, {transform_indices = @transform_1, window_bounds = array<i64: 1, 16, 32>}, {transform_indices = @transform_2, window_bounds = array<i64: 1, 1, 16>}, {pipeline_mode = #tpu.pipeline_mode<synchronous>, transform_indices = @transform_3, window_bounds = array<i64: 8, 32>}, {pipeline_mode = #tpu.pipeline_mode<synchronous>, transform_indices = @transform_4, window_bounds = array<i64: 1, 32>}, {pipeline_mode = #tpu.pipeline_mode<synchronous>, transform_indices = @transform_5, window_bounds = array<i64: 2, 32, 64>}, {pipeline_mode = #tpu.pipeline_mode<synchronous>, transform_indices = @transform_6, window_bounds = array<i64: 2, 1, 64>}, {pipeline_mode = #tpu.pipeline_mode<synchronous>, transform_indices = @transform_7, window_bounds = array<i64: 2, 32, 32>}, {pipeline_mode = #tpu.pipeline_mode<synchronous>, transform_indices = @transform_8, window_bounds = array<i64: 2, 1, 32>}, {pipeline_mode = #tpu.pipeline_mode<synchronous>, transform_indices = @transform_9, window_bounds = array<i64: 2, 32, 32>}, {pipeline_mode = #tpu.pipeline_mode<synchronous>, transform_indices = @transform_10, window_bounds = array<i64: 2, 1, 32>}, {pipeline_mode = #tpu.pipeline_mode<synchronous>, transform_indices = @transform_11, window_bounds = array<i64: 2, 1, 32>}, {pipeline_mode = #tpu.pipeline_mode<synchronous>, transform_indices = @transform_12, window_bounds = array<i64: 2, 1, 32>}, {pipeline_mode = #tpu.pipeline_mode<synchronous>, transform_indices = @transform_13, window_bounds = array<i64: 2, 32, 32>}, {pipeline_mode = #tpu.pipeline_mode<synchronous>, transform_indices = @transform_14, window_bounds = array<i64: 2, 1, 32>}, {pipeline_mode = #tpu.pipeline_mode<synchronous>, transform_indices = @transform_15, window_bounds = array<i64: 2, 32, 32>}, {pipeline_mode = #tpu.pipeline_mode<synchronous>, transform_indices = @transform_16, window_bounds = array<i64: 2, 1, 32>}, {pipeline_mode = #tpu.pipeline_mode<synchronous>, transform_indices = @transform_17, window_bounds = array<i64: 2, 1, 32>}, {pipeline_mode = #tpu.pipeline_mode<synchronous>, transform_indices = @transform_18, window_bounds = array<i64: 2, 1, 32>}, {pipeline_mode = #tpu.pipeline_mode<synchronous>, transform_indices = @transform_19, window_bounds = array<i64: 32, 4>}, {pipeline_mode = #tpu.pipeline_mode<synchronous>, transform_indices = @transform_20, window_bounds = array<i64: 1, 4>}, {transform_indices = @transform_21, window_bounds = array<i64: 1, 1, 32>}, {transform_indices = @transform_22, window_bounds = array<i64: 1, 16, 4>}]} {
    %c0 = arith.constant 0 : index
    %c0_0 = arith.constant 0 : index
    %c0_1 = arith.constant 0 : index
    %0 = vector.load %arg3[%c0, %c0_0, %c0_1] : memref<1x1x16xf32, #tpu.memory_space<vmem>>, vector<1x1x16xf32>
    %1 = vector.shape_cast %0 : vector<1x1x16xf32> to vector<1x16xf32>
    %c0_2 = arith.constant 0 : index
    %c0_3 = arith.constant 0 : index
    %c0_4 = arith.constant 0 : index
    %2 = vector.load %arg2[%c0_2, %c0_3, %c0_4] : memref<1x16x32xbf16, #tpu.memory_space<vmem>>, vector<1x16x32xbf16>
    %3 = vector.shape_cast %2 : vector<1x16x32xbf16> to vector<16x32xbf16>
    %4 = arith.extf %3 : vector<16x32xbf16> to vector<16x32xf32>
    %c0_5 = arith.constant 0 : index
    %c0_6 = arith.constant 0 : index
    %c0_7 = arith.constant 0 : index
    %5 = vector.load %arg1[%c0_5, %c0_6, %c0_7] : memref<1x16x8xf32, #tpu.memory_space<vmem>>, vector<1x16x8xf32>
    %6 = vector.shape_cast %5 : vector<1x16x8xf32> to vector<16x8xf32>
    %7 = arith.truncf %6 : vector<16x8xf32> to vector<16x8xbf16>
    %c0_8 = arith.constant 0 : index
    %c0_9 = arith.constant 0 : index
    %8 = vector.load %arg4[%c0_8, %c0_9] : memref<8x32xbf16, #tpu.memory_space<vmem>>, vector<8x32xbf16>
    %cst = arith.constant dense<0.000000e+00> : vector<16x32xf32>
    %9 = tpu.matmul %7, %8, %cst {dimension_numbers = #tpu.dot_dimension_numbers<[1], [0], [0], [1], [0, 0, 1, 1], [], []>} : vector<16x8xbf16>, vector<8x32xbf16>, vector<16x32xf32> -> vector<16x32xf32>
    %c0_10 = arith.constant 0 : index
    %c0_11 = arith.constant 0 : index
    %10 = vector.load %arg5[%c0_10, %c0_11] : memref<1x32xf32, #tpu.memory_space<vmem>>, vector<1x32xf32>
    %11 = vector.broadcast %10 : vector<1x32xf32> to vector<16x32xf32>
    %12 = arith.addf %9, %11 : vector<16x32xf32>
    %c0_12 = arith.constant 0 : index
    %c0_13 = arith.constant 0 : index
    %13 = vector.load %arg24[%c0_12, %c0_13] : memref<16x32xf32, #tpu.memory_space<vmem>>, vector<16x32xf32>
    tpu.vector_store %arg24[%c0_12, %c0_13], %12 {strides = array<i32>} : memref<16x32xf32, #tpu.memory_space<vmem>>, vector<16x32xf32>,
    %c0_i32 = arith.constant 0 : i32
    %c2_i32 = arith.constant 2 : i32
    %14 = arith.addi %c0_i32, %c2_i32 : i32
    %c1_i32 = arith.constant 1 : i32
    scf.for %arg25 = %c0_i32 to %14 step %c1_i32  : i32 {
      %c1_i32_28 = arith.constant 1 : i32
      %26 = arith.muli %arg25, %c1_i32_28 : i32
      %c0_i32_29 = arith.constant 0 : i32
      %27 = arith.addi %c0_i32_29, %26 : i32
      %c0_30 = arith.constant 0 : index
      %c0_31 = arith.constant 0 : index
      %28 = vector.load %arg24[%c0_30, %c0_31] : memref<16x32xf32, #tpu.memory_space<vmem>>, vector<16x32xf32>
      %29 = arith.addf %28, %4 : vector<16x32xf32>
      %30 = arith.truncf %29 : vector<16x32xf32> to vector<16x32xbf16>
      %31 = arith.index_cast %27 : i32 to index
      %c0_32 = arith.constant 0 : index
      %c0_33 = arith.constant 0 : index
      %32 = vector.load %arg6[%31, %c0_32, %c0_33] : memref<2x32x64xbf16, #tpu.memory_space<vmem>>, vector<1x32x64xbf16>
      %33 = vector.shape_cast %32 : vector<1x32x64xbf16> to vector<32x64xbf16>
      %cst_34 = arith.constant dense<0.000000e+00> : vector<16x64xf32>
      %34 = tpu.matmul %30, %33, %cst_34 {dimension_numbers = #tpu.dot_dimension_numbers<[1], [0], [0], [1], [0, 0, 1, 1], [], []>} : vector<16x32xbf16>, vector<32x64xbf16>, vector<16x64xf32> -> vector<16x64xf32>
      %35 = arith.index_cast %27 : i32 to index
      %c0_35 = arith.constant 0 : index
      %c0_36 = arith.constant 0 : index
      %36 = vector.load %arg7[%35, %c0_35, %c0_36] : memref<2x1x64xf32, #tpu.memory_space<vmem>>, vector<1x1x64xf32>
      %37 = vector.shape_cast %36 : vector<1x1x64xf32> to vector<1x64xf32>
      %38 = vector.broadcast %37 : vector<1x64xf32> to vector<16x64xf32>
      %39 = arith.addf %34, %38 : vector<16x64xf32>
      %40 = arith.truncf %28 : vector<16x32xf32> to vector<16x32xbf16>
      %41 = arith.index_cast %27 : i32 to index
      %c0_37 = arith.constant 0 : index
      %c0_38 = arith.constant 0 : index
      %42 = vector.load %arg8[%41, %c0_37, %c0_38] : memref<2x32x32xbf16, #tpu.memory_space<vmem>>, vector<1x32x32xbf16>
      %43 = vector.shape_cast %42 : vector<1x32x32xbf16> to vector<32x32xbf16>
      %cst_39 = arith.constant dense<0.000000e+00> : vector<16x32xf32>
      %44 = tpu.matmul %40, %43, %cst_39 {dimension_numbers = #tpu.dot_dimension_numbers<[1], [0], [0], [1], [0, 0, 1, 1], [], []>} : vector<16x32xbf16>, vector<32x32xbf16>, vector<16x32xf32> -> vector<16x32xf32>
      %45 = arith.index_cast %27 : i32 to index
      %c0_40 = arith.constant 0 : index
      %c0_41 = arith.constant 0 : index
      %46 = vector.load %arg9[%45, %c0_40, %c0_41] : memref<2x1x32xf32, #tpu.memory_space<vmem>>, vector<1x1x32xf32>
      %47 = vector.shape_cast %46 : vector<1x1x32xf32> to vector<1x32xf32>
      %48 = vector.broadcast %47 : vector<1x32xf32> to vector<16x32xf32>
      %49 = arith.addf %44, %48 : vector<16x32xf32>
      %50 = vector.extract_strided_slice %39 {offsets = [0, 0], sizes = [16, 8], strides = [1, 1]} : vector<16x64xf32> to vector<16x8xf32>
      %51 = arith.truncf %50 : vector<16x8xf32> to vector<16x8xbf16>
      %52 = vector.extract_strided_slice %39 {offsets = [0, 32], sizes = [16, 8], strides = [1, 1]} : vector<16x64xf32> to vector<16x8xf32>
      %53 = arith.truncf %52 : vector<16x8xf32> to vector<16x8xbf16>
      %54 = vector.extract_strided_slice %49 {offsets = [0, 0], sizes = [16, 8], strides = [1, 1]} : vector<16x32xf32> to vector<16x8xf32>
      %55 = arith.truncf %54 : vector<16x8xf32> to vector<16x8xbf16>
      "tpu.trace_start"() <{level = 10 : i32, message = "qd,kd->qk"}> : () -> ()
      %cst_42 = arith.constant dense<0.000000e+00> : vector<16x16xf32>
      %56 = tpu.matmul %51, %53, %cst_42 {dimension_numbers = #tpu.dot_dimension_numbers<[1], [1], [0], [0], [0, 0, 1, 0], [], []>} : vector<16x8xbf16>, vector<16x8xbf16>, vector<16x16xf32> -> vector<16x16xf32>
      "tpu.trace_stop"() : () -> ()
      %cst_43 = arith.constant 0.353553385 : f32
      %57 = vector.broadcast %cst_43 : f32 to vector<16x16xf32>
      %58 = arith.mulf %56, %57 : vector<16x16xf32>
      %59 = vector.broadcast %1 : vector<1x16xf32> to vector<16x16xf32>
      %60 = arith.addf %58, %59 : vector<16x16xf32>
      %cst_44 = arith.constant dense<0xFF800000> : vector<16xf32>
      %61 = vector.multi_reduction <maximumf>, %60, %cst_44 [1] : vector<16x16xf32> to vector<16xf32>
      %62 = vector.shape_cast %61 : vector<16xf32> to vector<16x1xf32>
      %63 = vector.broadcast %62 : vector<16x1xf32> to vector<16x16xf32>
      %64 = arith.subf %60, %63 : vector<16x16xf32>
      %65 = math.exp %64 : vector<16x16xf32>
      %cst_45 = arith.constant dense<0.000000e+00> : vector<16xf32>
      %66 = vector.multi_reduction <add>, %65, %cst_45 [1] : vector<16x16xf32> to vector<16xf32>
      %67 = vector.shape_cast %66 : vector<16xf32> to vector<16x1xf32>
      %68 = vector.broadcast %67 : vector<16x1xf32> to vector<16x16xf32>
      %69 = arith.divf %65, %68 : vector<16x16xf32>
      %70 = arith.truncf %69 : vector<16x16xf32> to vector<16x16xbf16>
      %cst_46 = arith.constant dense<0.000000e+00> : vector<16x8xf32>
      %71 = tpu.matmul %70, %55, %cst_46 {dimension_numbers = #tpu.dot_dimension_numbers<[1], [0], [0], [1], [0, 0, 1, 1], [], []>} : vector<16x16xbf16>, vector<16x8xbf16>, vector<16x8xf32> -> vector<16x8xf32>
      %72 = vector.extract_strided_slice %39 {offsets = [0, 8], sizes = [16, 8], strides = [1, 1]} : vector<16x64xf32> to vector<16x8xf32>
      %73 = arith.truncf %72 : vector<16x8xf32> to vector<16x8xbf16>
      %74 = vector.extract_strided_slice %39 {offsets = [0, 40], sizes = [16, 8], strides = [1, 1]} : vector<16x64xf32> to vector<16x8xf32>
      %75 = arith.truncf %74 : vector<16x8xf32> to vector<16x8xbf16>
      %76 = vector.extract_strided_slice %49 {offsets = [0, 8], sizes = [16, 8], strides = [1, 1]} : vector<16x32xf32> to vector<16x8xf32>
      %77 = arith.truncf %76 : vector<16x8xf32> to vector<16x8xbf16>
      "tpu.trace_start"() <{level = 10 : i32, message = "qd,kd->qk"}> : () -> ()
      %cst_47 = arith.constant dense<0.000000e+00> : vector<16x16xf32>
      %78 = tpu.matmul %73, %75, %cst_47 {dimension_numbers = #tpu.dot_dimension_numbers<[1], [1], [0], [0], [0, 0, 1, 0], [], []>} : vector<16x8xbf16>, vector<16x8xbf16>, vector<16x16xf32> -> vector<16x16xf32>
      "tpu.trace_stop"() : () -> ()
      %cst_48 = arith.constant 0.353553385 : f32
      %79 = vector.broadcast %cst_48 : f32 to vector<16x16xf32>
      %80 = arith.mulf %78, %79 : vector<16x16xf32>
      %81 = vector.broadcast %1 : vector<1x16xf32> to vector<16x16xf32>
      %82 = arith.addf %80, %81 : vector<16x16xf32>
      %cst_49 = arith.constant dense<0xFF800000> : vector<16xf32>
      %83 = vector.multi_reduction <maximumf>, %82, %cst_49 [1] : vector<16x16xf32> to vector<16xf32>
      %84 = vector.shape_cast %83 : vector<16xf32> to vector<16x1xf32>
      %85 = vector.broadcast %84 : vector<16x1xf32> to vector<16x16xf32>
      %86 = arith.subf %82, %85 : vector<16x16xf32>
      %87 = math.exp %86 : vector<16x16xf32>
      %cst_50 = arith.constant dense<0.000000e+00> : vector<16xf32>
      %88 = vector.multi_reduction <add>, %87, %cst_50 [1] : vector<16x16xf32> to vector<16xf32>
      %89 = vector.shape_cast %88 : vector<16xf32> to vector<16x1xf32>
      %90 = vector.broadcast %89 : vector<16x1xf32> to vector<16x16xf32>
      %91 = arith.divf %87, %90 : vector<16x16xf32>
      %92 = arith.truncf %91 : vector<16x16xf32> to vector<16x16xbf16>
      %cst_51 = arith.constant dense<0.000000e+00> : vector<16x8xf32>
      %93 = tpu.matmul %92, %77, %cst_51 {dimension_numbers = #tpu.dot_dimension_numbers<[1], [0], [0], [1], [0, 0, 1, 1], [], []>} : vector<16x16xbf16>, vector<16x8xbf16>, vector<16x8xf32> -> vector<16x8xf32>
      %94 = vector.extract_strided_slice %39 {offsets = [0, 16], sizes = [16, 8], strides = [1, 1]} : vector<16x64xf32> to vector<16x8xf32>
      %95 = arith.truncf %94 : vector<16x8xf32> to vector<16x8xbf16>
      %96 = vector.extract_strided_slice %39 {offsets = [0, 48], sizes = [16, 8], strides = [1, 1]} : vector<16x64xf32> to vector<16x8xf32>
      %97 = arith.truncf %96 : vector<16x8xf32> to vector<16x8xbf16>
      %98 = vector.extract_strided_slice %49 {offsets = [0, 16], sizes = [16, 8], strides = [1, 1]} : vector<16x32xf32> to vector<16x8xf32>
      %99 = arith.truncf %98 : vector<16x8xf32> to vector<16x8xbf16>
      "tpu.trace_start"() <{level = 10 : i32, message = "qd,kd->qk"}> : () -> ()
      %cst_52 = arith.constant dense<0.000000e+00> : vector<16x16xf32>
      %100 = tpu.matmul %95, %97, %cst_52 {dimension_numbers = #tpu.dot_dimension_numbers<[1], [1], [0], [0], [0, 0, 1, 0], [], []>} : vector<16x8xbf16>, vector<16x8xbf16>, vector<16x16xf32> -> vector<16x16xf32>
      "tpu.trace_stop"() : () -> ()
      %cst_53 = arith.constant 0.353553385 : f32
      %101 = vector.broadcast %cst_53 : f32 to vector<16x16xf32>
      %102 = arith.mulf %100, %101 : vector<16x16xf32>
      %103 = vector.broadcast %1 : vector<1x16xf32> to vector<16x16xf32>
      %104 = arith.addf %102, %103 : vector<16x16xf32>
      %cst_54 = arith.constant dense<0xFF800000> : vector<16xf32>
      %105 = vector.multi_reduction <maximumf>, %104, %cst_54 [1] : vector<16x16xf32> to vector<16xf32>
      %106 = vector.shape_cast %105 : vector<16xf32> to vector<16x1xf32>
      %107 = vector.broadcast %106 : vector<16x1xf32> to vector<16x16xf32>
      %108 = arith.subf %104, %107 : vector<16x16xf32>
      %109 = math.exp %108 : vector<16x16xf32>
      %cst_55 = arith.constant dense<0.000000e+00> : vector<16xf32>
      %110 = vector.multi_reduction <add>, %109, %cst_55 [1] : vector<16x16xf32> to vector<16xf32>
      %111 = vector.shape_cast %110 : vector<16xf32> to vector<16x1xf32>
      %112 = vector.broadcast %111 : vector<16x1xf32> to vector<16x16xf32>
      %113 = arith.divf %109, %112 : vector<16x16xf32>
      %114 = arith.truncf %113 : vector<16x16xf32> to vector<16x16xbf16>
      %cst_56 = arith.constant dense<0.000000e+00> : vector<16x8xf32>
      %115 = tpu.matmul %114, %99, %cst_56 {dimension_numbers = #tpu.dot_dimension_numbers<[1], [0], [0], [1], [0, 0, 1, 1], [], []>} : vector<16x16xbf16>, vector<16x8xbf16>, vector<16x8xf32> -> vector<16x8xf32>
      %116 = vector.extract_strided_slice %39 {offsets = [0, 24], sizes = [16, 8], strides = [1, 1]} : vector<16x64xf32> to vector<16x8xf32>
      %117 = arith.truncf %116 : vector<16x8xf32> to vector<16x8xbf16>
      %118 = vector.extract_strided_slice %39 {offsets = [0, 56], sizes = [16, 8], strides = [1, 1]} : vector<16x64xf32> to vector<16x8xf32>
      %119 = arith.truncf %118 : vector<16x8xf32> to vector<16x8xbf16>
      %120 = vector.extract_strided_slice %49 {offsets = [0, 24], sizes = [16, 8], strides = [1, 1]} : vector<16x32xf32> to vector<16x8xf32>
      %121 = arith.truncf %120 : vector<16x8xf32> to vector<16x8xbf16>
      "tpu.trace_start"() <{level = 10 : i32, message = "qd,kd->qk"}> : () -> ()
      %cst_57 = arith.constant dense<0.000000e+00> : vector<16x16xf32>
      %122 = tpu.matmul %117, %119, %cst_57 {dimension_numbers = #tpu.dot_dimension_numbers<[1], [1], [0], [0], [0, 0, 1, 0], [], []>} : vector<16x8xbf16>, vector<16x8xbf16>, vector<16x16xf32> -> vector<16x16xf32>
      "tpu.trace_stop"() : () -> ()
      %cst_58 = arith.constant 0.353553385 : f32
      %123 = vector.broadcast %cst_58 : f32 to vector<16x16xf32>
      %124 = arith.mulf %122, %123 : vector<16x16xf32>
      %125 = vector.broadcast %1 : vector<1x16xf32> to vector<16x16xf32>
      %126 = arith.addf %124, %125 : vector<16x16xf32>
      %cst_59 = arith.constant dense<0xFF800000> : vector<16xf32>
      %127 = vector.multi_reduction <maximumf>, %126, %cst_59 [1] : vector<16x16xf32> to vector<16xf32>
      %128 = vector.shape_cast %127 : vector<16xf32> to vector<16x1xf32>
      %129 = vector.broadcast %128 : vector<16x1xf32> to vector<16x16xf32>
      %130 = arith.subf %126, %129 : vector<16x16xf32>
      %131 = math.exp %130 : vector<16x16xf32>
      %cst_60 = arith.constant dense<0.000000e+00> : vector<16xf32>
      %132 = vector.multi_reduction <add>, %131, %cst_60 [1] : vector<16x16xf32> to vector<16xf32>
      %133 = vector.shape_cast %132 : vector<16xf32> to vector<16x1xf32>
      %134 = vector.broadcast %133 : vector<16x1xf32> to vector<16x16xf32>
      %135 = arith.divf %131, %134 : vector<16x16xf32>
      %136 = arith.truncf %135 : vector<16x16xf32> to vector<16x16xbf16>
      %cst_61 = arith.constant dense<0.000000e+00> : vector<16x8xf32>
      %137 = tpu.matmul %136, %121, %cst_61 {dimension_numbers = #tpu.dot_dimension_numbers<[1], [0], [0], [1], [0, 0, 1, 1], [], []>} : vector<16x16xbf16>, vector<16x8xbf16>, vector<16x8xf32> -> vector<16x8xf32>
      %138 = tpu.concatenate %71, %93, %115, %137 in 1 : vector<16x8xf32>, vector<16x8xf32>, vector<16x8xf32>, vector<16x8xf32> -> vector<16x32xf32>
      %139 = arith.truncf %138 : vector<16x32xf32> to vector<16x32xbf16>
      %140 = arith.index_cast %27 : i32 to index
      %c0_62 = arith.constant 0 : index
      %c0_63 = arith.constant 0 : index
      %141 = vector.load %arg10[%140, %c0_62, %c0_63] : memref<2x32x32xbf16, #tpu.memory_space<vmem>>, vector<1x32x32xbf16>
      %142 = vector.shape_cast %141 : vector<1x32x32xbf16> to vector<32x32xbf16>
      %cst_64 = arith.constant dense<0.000000e+00> : vector<16x32xf32>
      %143 = tpu.matmul %139, %142, %cst_64 {dimension_numbers = #tpu.dot_dimension_numbers<[1], [0], [0], [1], [0, 0, 1, 1], [], []>} : vector<16x32xbf16>, vector<32x32xbf16>, vector<16x32xf32> -> vector<16x32xf32>
      %144 = arith.index_cast %27 : i32 to index
      %c0_65 = arith.constant 0 : index
      %c0_66 = arith.constant 0 : index
      %145 = vector.load %arg11[%144, %c0_65, %c0_66] : memref<2x1x32xf32, #tpu.memory_space<vmem>>, vector<1x1x32xf32>
      %146 = vector.shape_cast %145 : vector<1x1x32xf32> to vector<1x32xf32>
      %147 = vector.broadcast %146 : vector<1x32xf32> to vector<16x32xf32>
      %148 = arith.addf %143, %147 : vector<16x32xf32>
      %149 = arith.addf %28, %148 : vector<16x32xf32>
      %150 = arith.index_cast %27 : i32 to index
      %c0_67 = arith.constant 0 : index
      %c0_68 = arith.constant 0 : index
      %151 = vector.load %arg12[%150, %c0_67, %c0_68] : memref<2x1x32xf32, #tpu.memory_space<vmem>>, vector<1x1x32xf32>
      %152 = vector.shape_cast %151 : vector<1x1x32xf32> to vector<1x32xf32>
      %153 = arith.index_cast %27 : i32 to index
      %c0_69 = arith.constant 0 : index
      %c0_70 = arith.constant 0 : index
      %154 = vector.load %arg13[%153, %c0_69, %c0_70] : memref<2x1x32xf32, #tpu.memory_space<vmem>>, vector<1x1x32xf32>
      %155 = vector.shape_cast %154 : vector<1x1x32xf32> to vector<1x32xf32>
      %cst_71 = arith.constant dense<0.000000e+00> : vector<16xf32>
      %156 = vector.multi_reduction <add>, %149, %cst_71 [1] : vector<16x32xf32> to vector<16xf32>
      %157 = vector.shape_cast %156 : vector<16xf32> to vector<16x1xf32>
      %cst_72 = arith.constant 3.200000e+01 : f32
      %158 = vector.broadcast %cst_72 : f32 to vector<16x1xf32>
      %159 = arith.divf %157, %158 : vector<16x1xf32>
      %160 = vector.broadcast %159 : vector<16x1xf32> to vector<16x32xf32>
      %161 = arith.subf %149, %160 : vector<16x32xf32>
      %162 = arith.mulf %161, %161 : vector<16x32xf32>
      %cst_73 = arith.constant dense<0.000000e+00> : vector<16xf32>
      %163 = vector.multi_reduction <add>, %162, %cst_73 [1] : vector<16x32xf32> to vector<16xf32>
      %164 = vector.shape_cast %163 : vector<16xf32> to vector<16x1xf32>
      %cst_74 = arith.constant 3.200000e+01 : f32
      %165 = vector.broadcast %cst_74 : f32 to vector<16x1xf32>
      %166 = arith.divf %164, %165 : vector<16x1xf32>
      %167 = vector.broadcast %159 : vector<16x1xf32> to vector<16x32xf32>
      %168 = arith.subf %149, %167 : vector<16x32xf32>
      %cst_75 = arith.constant 9.99999974E-6 : f32
      %169 = vector.broadcast %cst_75 : f32 to vector<16x1xf32>
      %170 = arith.addf %166, %169 : vector<16x1xf32>
      %171 = math.rsqrt %170 : vector<16x1xf32>
      %172 = vector.broadcast %171 : vector<16x1xf32> to vector<16x32xf32>
      %173 = arith.mulf %168, %172 : vector<16x32xf32>
      %174 = vector.broadcast %152 : vector<1x32xf32> to vector<16x32xf32>
      %175 = arith.mulf %173, %174 : vector<16x32xf32>
      %176 = vector.broadcast %155 : vector<1x32xf32> to vector<16x32xf32>
      %177 = arith.addf %175, %176 : vector<16x32xf32>
      %178 = arith.truncf %177 : vector<16x32xf32> to vector<16x32xbf16>
      %179 = arith.index_cast %27 : i32 to index
      %c0_76 = arith.constant 0 : index
      %c0_77 = arith.constant 0 : index
      %180 = vector.load %arg14[%179, %c0_76, %c0_77] : memref<2x32x32xbf16, #tpu.memory_space<vmem>>, vector<1x32x32xbf16>
      %181 = vector.shape_cast %180 : vector<1x32x32xbf16> to vector<32x32xbf16>
      %cst_78 = arith.constant dense<0.000000e+00> : vector<16x32xf32>
      %182 = tpu.matmul %178, %181, %cst_78 {dimension_numbers = #tpu.dot_dimension_numbers<[1], [0], [0], [1], [0, 0, 1, 1], [], []>} : vector<16x32xbf16>, vector<32x32xbf16>, vector<16x32xf32> -> vector<16x32xf32>
      %183 = arith.index_cast %27 : i32 to index
      %c0_79 = arith.constant 0 : index
      %c0_80 = arith.constant 0 : index
      %184 = vector.load %arg15[%183, %c0_79, %c0_80] : memref<2x1x32xf32, #tpu.memory_space<vmem>>, vector<1x1x32xf32>
      %185 = vector.shape_cast %184 : vector<1x1x32xf32> to vector<1x32xf32>
      %186 = vector.broadcast %185 : vector<1x32xf32> to vector<16x32xf32>
      %187 = arith.addf %182, %186 : vector<16x32xf32>
      %cst_81 = arith.constant 0.000000e+00 : f32
      %188 = vector.broadcast %cst_81 : f32 to vector<16x32xf32>
      %189 = arith.maximumf %187, %188 : vector<16x32xf32>
      %190 = arith.truncf %189 : vector<16x32xf32> to vector<16x32xbf16>
      %191 = arith.index_cast %27 : i32 to index
      %c0_82 = arith.constant 0 : index
      %c0_83 = arith.constant 0 : index
      %192 = vector.load %arg16[%191, %c0_82, %c0_83] : memref<2x32x32xbf16, #tpu.memory_space<vmem>>, vector<1x32x32xbf16>
      %193 = vector.shape_cast %192 : vector<1x32x32xbf16> to vector<32x32xbf16>
      %cst_84 = arith.constant dense<0.000000e+00> : vector<16x32xf32>
      %194 = tpu.matmul %190, %193, %cst_84 {dimension_numbers = #tpu.dot_dimension_numbers<[1], [0], [0], [1], [0, 0, 1, 1], [], []>} : vector<16x32xbf16>, vector<32x32xbf16>, vector<16x32xf32> -> vector<16x32xf32>
      %195 = arith.index_cast %27 : i32 to index
      %c0_85 = arith.constant 0 : index
      %c0_86 = arith.constant 0 : index
      %196 = vector.load %arg17[%195, %c0_85, %c0_86] : memref<2x1x32xf32, #tpu.memory_space<vmem>>, vector<1x1x32xf32>
      %197 = vector.shape_cast %196 : vector<1x1x32xf32> to vector<1x32xf32>
      %198 = vector.broadcast %197 : vector<1x32xf32> to vector<16x32xf32>
      %199 = arith.addf %194, %198 : vector<16x32xf32>
      %200 = arith.addf %177, %199 : vector<16x32xf32>
      %201 = arith.index_cast %27 : i32 to index
      %c0_87 = arith.constant 0 : index
      %c0_88 = arith.constant 0 : index
      %202 = vector.load %arg18[%201, %c0_87, %c0_88] : memref<2x1x32xf32, #tpu.memory_space<vmem>>, vector<1x1x32xf32>
      %203 = vector.shape_cast %202 : vector<1x1x32xf32> to vector<1x32xf32>
      %204 = arith.index_cast %27 : i32 to index
      %c0_89 = arith.constant 0 : index
      %c0_90 = arith.constant 0 : index
      %205 = vector.load %arg19[%204, %c0_89, %c0_90] : memref<2x1x32xf32, #tpu.memory_space<vmem>>, vector<1x1x32xf32>
      %206 = vector.shape_cast %205 : vector<1x1x32xf32> to vector<1x32xf32>
      %cst_91 = arith.constant dense<0.000000e+00> : vector<16xf32>
      %207 = vector.multi_reduction <add>, %200, %cst_91 [1] : vector<16x32xf32> to vector<16xf32>
      %208 = vector.shape_cast %207 : vector<16xf32> to vector<16x1xf32>
      %cst_92 = arith.constant 3.200000e+01 : f32
      %209 = vector.broadcast %cst_92 : f32 to vector<16x1xf32>
      %210 = arith.divf %208, %209 : vector<16x1xf32>
      %211 = vector.broadcast %210 : vector<16x1xf32> to vector<16x32xf32>
      %212 = arith.subf %200, %211 : vector<16x32xf32>
      %213 = arith.mulf %212, %212 : vector<16x32xf32>
      %cst_93 = arith.constant dense<0.000000e+00> : vector<16xf32>
      %214 = vector.multi_reduction <add>, %213, %cst_93 [1] : vector<16x32xf32> to vector<16xf32>
      %215 = vector.shape_cast %214 : vector<16xf32> to vector<16x1xf32>
      %cst_94 = arith.constant 3.200000e+01 : f32
      %216 = vector.broadcast %cst_94 : f32 to vector<16x1xf32>
      %217 = arith.divf %215, %216 : vector<16x1xf32>
      %218 = vector.broadcast %210 : vector<16x1xf32> to vector<16x32xf32>
      %219 = arith.subf %200, %218 : vector<16x32xf32>
      %cst_95 = arith.constant 9.99999974E-6 : f32
      %220 = vector.broadcast %cst_95 : f32 to vector<16x1xf32>
      %221 = arith.addf %217, %220 : vector<16x1xf32>
      %222 = math.rsqrt %221 : vector<16x1xf32>
      %223 = vector.broadcast %222 : vector<16x1xf32> to vector<16x32xf32>
      %224 = arith.mulf %219, %223 : vector<16x32xf32>
      %225 = vector.broadcast %203 : vector<1x32xf32> to vector<16x32xf32>
      %226 = arith.mulf %224, %225 : vector<16x32xf32>
      %227 = vector.broadcast %206 : vector<1x32xf32> to vector<16x32xf32>
      %228 = arith.addf %226, %227 : vector<16x32xf32>
      %c0_96 = arith.constant 0 : index
      %c0_97 = arith.constant 0 : index
      %229 = vector.load %arg24[%c0_96, %c0_97] : memref<16x32xf32, #tpu.memory_space<vmem>>, vector<16x32xf32>
      tpu.vector_store %arg24[%c0_96, %c0_97], %228 {strides = array<i32>} : memref<16x32xf32, #tpu.memory_space<vmem>>, vector<16x32xf32>,
    }
    %c2_i32_14 = arith.constant 2 : i32
    %c0_15 = arith.constant 0 : index
    %c0_16 = arith.constant 0 : index
    %15 = vector.load %arg24[%c0_15, %c0_16] : memref<16x32xf32, #tpu.memory_space<vmem>>, vector<16x32xf32>
    %16 = vector.extract_strided_slice %15 {offsets = [0, 0], sizes = [1, 32], strides = [1, 1]} : vector<16x32xf32> to vector<1x32xf32>
    %17 = vector.shape_cast %16 : vector<1x32xf32> to vector<1x1x32xf32>
    %c0_17 = arith.constant 0 : index
    %c0_18 = arith.constant 0 : index
    %c0_19 = arith.constant 0 : index
    %18 = vector.load %arg22[%c0_17, %c0_18, %c0_19] : memref<1x1x32xf32, #tpu.memory_space<vmem>>, vector<1x1x32xf32>
    tpu.vector_store %arg22[%c0_17, %c0_18, %c0_19], %17 {strides = array<i32>} : memref<1x1x32xf32, #tpu.memory_space<vmem>>, vector<1x1x32xf32>,
    %c0_20 = arith.constant 0 : index
    %c0_21 = arith.constant 0 : index
    %19 = vector.load %arg20[%c0_20, %c0_21] : memref<32x4xf32, #tpu.memory_space<vmem>>, vector<32x4xf32>
    %cst_22 = arith.constant dense<0.000000e+00> : vector<16x4xf32>
    %20 = tpu.matmul %15, %19, %cst_22 {dimension_numbers = #tpu.dot_dimension_numbers<[1], [0], [0], [1], [0, 0, 1, 1], [], []>} : vector<16x32xf32>, vector<32x4xf32>, vector<16x4xf32> -> vector<16x4xf32>
    %c0_23 = arith.constant 0 : index
    %c0_24 = arith.constant 0 : index
    %21 = vector.load %arg21[%c0_23, %c0_24] : memref<1x4xf32, #tpu.memory_space<vmem>>, vector<1x4xf32>
    %22 = vector.broadcast %21 : vector<1x4xf32> to vector<16x4xf32>
    %23 = arith.addf %20, %22 : vector<16x4xf32>
    %24 = vector.shape_cast %23 : vector<16x4xf32> to vector<1x16x4xf32>
    %c0_25 = arith.constant 0 : index
    %c0_26 = arith.constant 0 : index
    %c0_27 = arith.constant 0 : index
    %25 = vector.load %arg23[%c0_25, %c0_26, %c0_27] : memref<1x16x4xf32, #tpu.memory_space<vmem>>, vector<1x16x4xf32>
    tpu.vector_store %arg23[%c0_25, %c0_26, %c0_27], %24 {strides = array<i32>} : memref<1x16x4xf32, #tpu.memory_space<vmem>>, vector<1x16x4xf32>,
    return
  }
  func.func @transform_0(%arg0: i32) -> (i32, i32, i32) {
    %c0_i32 = arith.constant 0 : i32
    %c0_i32_0 = arith.constant 0 : i32
    %c0_i32_1 = arith.constant 0 : i32
    return %arg0, %c0_i32, %c0_i32_0 : i32, i32, i32
  }
  func.func @transform_1(%arg0: i32) -> (i32, i32, i32) {
    %c0_i32 = arith.constant 0 : i32
    %c0_i32_0 = arith.constant 0 : i32
    %c0_i32_1 = arith.constant 0 : i32
    return %arg0, %c0_i32, %c0_i32_0 : i32, i32, i32
  }
  func.func @transform_2(%arg0: i32) -> (i32, i32, i32) {
    %c0_i32 = arith.constant 0 : i32
    %c0_i32_0 = arith.constant 0 : i32
    %c0_i32_1 = arith.constant 0 : i32
    return %arg0, %c0_i32, %c0_i32_0 : i32, i32, i32
  }
  func.func @transform_3(%arg0: i32) -> (i32, i32) {
    %c0_i32 = arith.constant 0 : i32
    %c0_i32_0 = arith.constant 0 : i32
    %c0_i32_1 = arith.constant 0 : i32
    return %c0_i32, %c0_i32_0 : i32, i32
  }
  func.func @transform_4(%arg0: i32) -> (i32, i32) {
    %c0_i32 = arith.constant 0 : i32
    %c0_i32_0 = arith.constant 0 : i32
    %c0_i32_1 = arith.constant 0 : i32
    return %c0_i32, %c0_i32_0 : i32, i32
  }
  func.func @transform_5(%arg0: i32) -> (i32, i32, i32) {
    %c0_i32 = arith.constant 0 : i32
    %c0_i32_0 = arith.constant 0 : i32
    %c0_i32_1 = arith.constant 0 : i32
    %c0_i32_2 = arith.constant 0 : i32
    return %c0_i32, %c0_i32_0, %c0_i32_1 : i32, i32, i32
  }
  func.func @transform_6(%arg0: i32) -> (i32, i32, i32) {
    %c0_i32 = arith.constant 0 : i32
    %c0_i32_0 = arith.constant 0 : i32
    %c0_i32_1 = arith.constant 0 : i32
    %c0_i32_2 = arith.constant 0 : i32
    return %c0_i32, %c0_i32_0, %c0_i32_1 : i32, i32, i32
  }
  func.func @transform_7(%arg0: i32) -> (i32, i32, i32) {
    %c0_i32 = arith.constant 0 : i32
    %c0_i32_0 = arith.constant 0 : i32
    %c0_i32_1 = arith.constant 0 : i32
    %c0_i32_2 = arith.constant 0 : i32
    return %c0_i32, %c0_i32_0, %c0_i32_1 : i32, i32, i32
  }
  func.func @transform_8(%arg0: i32) -> (i32, i32, i32) {
    %c0_i32 = arith.constant 0 : i32
    %c0_i32_0 = arith.constant 0 : i32
    %c0_i32_1 = arith.constant 0 : i32
    %c0_i32_2 = arith.constant 0 : i32
    return %c0_i32, %c0_i32_0, %c0_i32_1 : i32, i32, i32
  }
  func.func @transform_9(%arg0: i32) -> (i32, i32, i32) {
    %c0_i32 = arith.constant 0 : i32
    %c0_i32_0 = arith.constant 0 : i32
    %c0_i32_1 = arith.constant 0 : i32
    %c0_i32_2 = arith.constant 0 : i32
    return %c0_i32, %c0_i32_0, %c0_i32_1 : i32, i32, i32
  }
  func.func @transform_10(%arg0: i32) -> (i32, i32, i32) {
    %c0_i32 = arith.constant 0 : i32
    %c0_i32_0 = arith.constant 0 : i32
    %c0_i32_1 = arith.constant 0 : i32
    %c0_i32_2 = arith.constant 0 : i32
    return %c0_i32, %c0_i32_0, %c0_i32_1 : i32, i32, i32
  }
  func.func @transform_11(%arg0: i32) -> (i32, i32, i32) {
    %c0_i32 = arith.constant 0 : i32
    %c0_i32_0 = arith.constant 0 : i32
    %c0_i32_1 = arith.constant 0 : i32
    %c0_i32_2 = arith.constant 0 : i32
    return %c0_i32, %c0_i32_0, %c0_i32_1 : i32, i32, i32
  }
  func.func @transform_12(%arg0: i32) -> (i32, i32, i32) {
    %c0_i32 = arith.constant 0 : i32
    %c0_i32_0 = arith.constant 0 : i32
    %c0_i32_1 = arith.constant 0 : i32
    %c0_i32_2 = arith.constant 0 : i32
    return %c0_i32, %c0_i32_0, %c0_i32_1 : i32, i32, i32
  }
  func.func @transform_13(%arg0: i32) -> (i32, i32, i32) {
    %c0_i32 = arith.constant 0 : i32
    %c0_i32_0 = arith.constant 0 : i32
    %c0_i32_1 = arith.constant 0 : i32
    %c0_i32_2 = arith.constant 0 : i32
    return %c0_i32, %c0_i32_0, %c0_i32_1 : i32, i32, i32
  }
  func.func @transform_14(%arg0: i32) -> (i32, i32, i32) {
    %c0_i32 = arith.constant 0 : i32
    %c0_i32_0 = arith.constant 0 : i32
    %c0_i32_1 = arith.constant 0 : i32
    %c0_i32_2 = arith.constant 0 : i32
    return %c0_i32, %c0_i32_0, %c0_i32_1 : i32, i32, i32
  }
  func.func @transform_15(%arg0: i32) -> (i32, i32, i32) {
    %c0_i32 = arith.constant 0 : i32
    %c0_i32_0 = arith.constant 0 : i32
    %c0_i32_1 = arith.constant 0 : i32
    %c0_i32_2 = arith.constant 0 : i32
    return %c0_i32, %c0_i32_0, %c0_i32_1 : i32, i32, i32
  }
  func.func @transform_16(%arg0: i32) -> (i32, i32, i32) {
    %c0_i32 = arith.constant 0 : i32
    %c0_i32_0 = arith.constant 0 : i32
    %c0_i32_1 = arith.constant 0 : i32
    %c0_i32_2 = arith.constant 0 : i32
    return %c0_i32, %c0_i32_0, %c0_i32_1 : i32, i32, i32
  }
  func.func @transform_17(%arg0: i32) -> (i32, i32, i32) {
    %c0_i32 = arith.constant 0 : i32
    %c0_i32_0 = arith.constant 0 : i32
    %c0_i32_1 = arith.constant 0 : i32
    %c0_i32_2 = arith.constant 0 : i32
    return %c0_i32, %c0_i32_0, %c0_i32_1 : i32, i32, i32
  }
  func.func @transform_18(%arg0: i32) -> (i32, i32, i32) {
    %c0_i32 = arith.constant 0 : i32
    %c0_i32_0 = arith.constant 0 : i32
    %c0_i32_1 = arith.constant 0 : i32
    %c0_i32_2 = arith.constant 0 : i32
    return %c0_i32, %c0_i32_0, %c0_i32_1 : i32, i32, i32
  }
  func.func @transform_19(%arg0: i32) -> (i32, i32) {
    %c0_i32 = arith.constant 0 : i32
    %c0_i32_0 = arith.constant 0 : i32
    %c0_i32_1 = arith.constant 0 : i32
    return %c0_i32, %c0_i32_0 : i32, i32
  }
  func.func @transform_20(%arg0: i32) -> (i32, i32) {
    %c0_i32 = arith.constant 0 : i32
    %c0_i32_0 = arith.constant 0 : i32
    %c0_i32_1 = arith.constant 0 : i32
    return %c0_i32, %c0_i32_0 : i32, i32
  }
  func.func @transform_21(%arg0: i32) -> (i32, i32, i32) {
    %c0_i32 = arith.constant 0 : i32
    %c0_i32_0 = arith.constant 0 : i32
    %c0_i32_1 = arith.constant 0 : i32
    return %arg0, %c0_i32, %c0_i32_0 : i32, i32, i32
  }
  func.func @transform_22(%arg0: i32) -> (i32, i32, i32) {
    %c0_i32 = arith.constant 0 : i32
    %c0_i32_0 = arith.constant 0 : i32
    %c0_i32_1 = arith.constant 0 : i32
    return %arg0, %c0_i32, %c0_i32_0 : i32, i32, i32
  }
}

</mosaic_0001>

<llo_original>
// kernel: tpu_custom_call.1
$region0: #{tpu_custom_call.1}
  #allocation0 [shape = 'u32[]', space=smem, size = 0x4, offset = 0x4, fixed_abs, tag = 'smem constant byte address 0x4 - core index']
  #allocation1 [shape = 'u32[72,128]{1,0:T(1,128)}', space=vmem, size = 0x9000, scoped, tag = 'internal scratch']
  #allocation2 [shape = 'f32[16,32]{1,0:T(8,128)}', space=vmem, size = 0x2000, scoped, tag = 'scratch operand']
  %s0 = inlined_call_operand.vmem [shape: f32[12,16,8], index: 0, kind: input, shape index: {}]
  %s1 = inlined_call_operand.vmem [shape: bf16[12,16,32], index: 1, kind: input, shape index: {}]
  %s2 = inlined_call_operand.vmem [shape: f32[12,1,16], index: 2, kind: input, shape index: {}]
  %s3 = inlined_call_operand.vmem [shape: bf16[8,32], index: 3, kind: input, shape index: {}]
  %s4 = inlined_call_operand.vmem [shape: f32[1,32], index: 4, kind: input, shape index: {}]
  %s5 = inlined_call_operand.vmem [shape: bf16[2,32,64], index: 5, kind: input, shape index: {}]
  %s6 = inlined_call_operand.vmem [shape: f32[2,1,64], index: 6, kind: input, shape index: {}]
  %s7 = inlined_call_operand.vmem [shape: bf16[2,32,32], index: 7, kind: input, shape index: {}]
  %s8 = inlined_call_operand.vmem [shape: f32[2,1,32], index: 8, kind: input, shape index: {}]
  %s9 = inlined_call_operand.vmem [shape: bf16[2,32,32], index: 9, kind: input, shape index: {}]
  %s10 = inlined_call_operand.vmem [shape: f32[2,1,32], index: 10, kind: input, shape index: {}]
  %s11 = inlined_call_operand.vmem [shape: f32[2,1,32], index: 11, kind: input, shape index: {}]
  %s12 = inlined_call_operand.vmem [shape: f32[2,1,32], index: 12, kind: input, shape index: {}]
  %s13 = inlined_call_operand.vmem [shape: bf16[2,32,32], index: 13, kind: input, shape index: {}]
  %s14 = inlined_call_operand.vmem [shape: f32[2,1,32], index: 14, kind: input, shape index: {}]
  %s15 = inlined_call_operand.vmem [shape: bf16[2,32,32], index: 15, kind: input, shape index: {}]
  %s16 = inlined_call_operand.vmem [shape: f32[2,1,32], index: 16, kind: input, shape index: {}]
  %s17 = inlined_call_operand.vmem [shape: f32[2,1,32], index: 17, kind: input, shape index: {}]
  %s18 = inlined_call_operand.vmem [shape: f32[2,1,32], index: 18, kind: input, shape index: {}]
  %s19 = inlined_call_operand.vmem [shape: f32[32,4], index: 19, kind: input, shape index: {}]
  %s20 = inlined_call_operand.vmem [shape: f32[1,4], index: 20, kind: input, shape index: {}]
  %s21 = inlined_call_operand.hbm [shape: f32[12,1,32], index: 21, kind: output, shape index: {0}]
  %s22 = inlined_call_operand.vmem [shape: f32[12,16,4], index: 22, kind: output, shape index: {1}]
  %23 = xla_tuple %s21, %s22
  %s24 = sld [smem:[#allocation0]]
  $region132: #{tpu_custom_call.1} parent=0
    _
  %s26 = ssub.s32 1, %s24
  %s27 = scalar_select 0, %s26, %s24
  $region1: #{tpu_custom_call.1} parent=0
    #allocation3 [shape = 'u8[1024]{0}', space=vmem, size = 0x400, scoped, tag = 'output window, operand 0']
    #allocation4 [shape = 's32[2]{0}', space=sflag, size = 0x8, scoped, tag = 'scoped memory for tpu_custom_call.1']
    %28 = vsyncpa [#allocation4], 0
    %s29 = scalar_lea.sflag [#allocation4], 1
    %30 = vsyncpa %s29, 0
    loop: start=0, step=1, limit=14
    $region2: #{tpu_custom_call.1} parent=1 // loop_pre_header
      _
    $region3: #{tpu_custom_call.1} parent=1 // loop_header
      %s32 = sphi 0, %s36
      %p33 = scmp.ge.s32.totalorder %s32, 14
      %s42 = sphi 0, %s44
      %s45 = sphi 0, %s42
      %s46 = sphi 0, %s45
      %s62 = sphi 0, %s46
      %s68 = sphi 0, %s70
      %s71 = sphi 0, %s68
      %s72 = sphi 0, %s71
      %s88 = sphi 0, %s72
      %s94 = sphi 0, %s96
      %s97 = sphi 0, %s94
      %s98 = sphi 0, %s97
      %s114 = sphi 0, %s98
      %s118 = sphi 0, %s118
      %s120 = sphi 0, %s118
      %s121 = sphi 0, %s120
      %s135 = sphi 0, %s121
      %s139 = sphi 0, %s139
      %s141 = sphi 0, %s139
      %s142 = sphi 0, %s141
      %s156 = sphi 0, %s142
      %s160 = sphi 0, %s160
      %s162 = sphi 0, %s160
      %s163 = sphi 0, %s162
      %s177 = sphi 0, %s163
      %s181 = sphi 0, %s181
      %s183 = sphi 0, %s181
      %s184 = sphi 0, %s183
      %s198 = sphi 0, %s184
      %s202 = sphi 0, %s202
      %s204 = sphi 0, %s202
      %s205 = sphi 0, %s204
      %s219 = sphi 0, %s205
      %s223 = sphi 0, %s223
      %s225 = sphi 0, %s223
      %s226 = sphi 0, %s225
      %s240 = sphi 0, %s226
      %s244 = sphi 0, %s244
      %s246 = sphi 0, %s244
      %s247 = sphi 0, %s246
      %s261 = sphi 0, %s247
      %s265 = sphi 0, %s265
      %s267 = sphi 0, %s265
      %s268 = sphi 0, %s267
      %s282 = sphi 0, %s268
      %s286 = sphi 0, %s286
      %s288 = sphi 0, %s286
      %s289 = sphi 0, %s288
      %s303 = sphi 0, %s289
      %s307 = sphi 0, %s307
      %s309 = sphi 0, %s307
      %s310 = sphi 0, %s309
      %s324 = sphi 0, %s310
      %s328 = sphi 0, %s328
      %s330 = sphi 0, %s328
      %s331 = sphi 0, %s330
      %s345 = sphi 0, %s331
      %s349 = sphi 0, %s349
      %s351 = sphi 0, %s349
      %s352 = sphi 0, %s351
      %s366 = sphi 0, %s352
      %s370 = sphi 0, %s370
      %s372 = sphi 0, %s370
      %s373 = sphi 0, %s372
      %s387 = sphi 0, %s373
      %s391 = sphi 0, %s391
      %s393 = sphi 0, %s391
      %s394 = sphi 0, %s393
      %s408 = sphi 0, %s394
      %s412 = sphi 0, %s412
      %s414 = sphi 0, %s412
      %s415 = sphi 0, %s414
      %s429 = sphi 0, %s415
      %s433 = sphi 0, %s433
      %s435 = sphi 0, %s433
      %s436 = sphi 0, %s435
      %s450 = sphi 0, %s436
      %s454 = sphi 0, %s454
      %s456 = sphi 0, %s454
      %s457 = sphi 0, %s456
      %s471 = sphi 0, %s457
      %s475 = sphi 0, %s475
      %s477 = sphi 0, %s475
      %s478 = sphi 0, %s477
      %s492 = sphi 0, %s478
      %s498 = sphi 0, %s500
      %s501 = sphi 0, %s498
      %s502 = sphi 0, %s501
      %s518 = sphi 0, %s502
      %s524 = sphi 0, %s526
      %s527 = sphi 0, %s524
      %s528 = sphi 0, %s527
      %s544 = sphi 0, %s528
    $region4: #{tpu_custom_call.1} parent=1 // loop_header_branch
      %35 = sbr.rel (%p33) target = $region8
    $region5: #{tpu_custom_call.1} parent=1 // loop_body
      %s37 = ssub.s32 %s32, 1
      %s38 = ssub.s32 %s32, 2
      %s39 = sadd.s32 %s32, 1
      %s40 = ssub.s32 %s32, %s39
      %p41 = scmp.eq.s32.totalorder %s40, 0
      %s43 = sadd.s32 %s42, 1
      %s44 = scalar_select %p41, %s42, %s43
      %p47 = pneg %p41
      %p48 = scmp.eq.s32.totalorder %s32, 11
      %p49 = por %p47, %p48
      %p50 = scmp.ne.s32.totalorder %s42, %s45
      %p51 = scmp.eq.s32.totalorder %s32, 0
      %p52 = por %p50, %p51
      %p53 = scmp.ne.s32.totalorder %s42, %s45
      %p54 = scmp.eq.s32.totalorder %s37, 11
      %p55 = por %p53, %p54
      %p56 = scmp.ne.s32.totalorder %s45, %s46
      %p57 = scmp.eq.s32.totalorder %s37, 0
      %p58 = por %p56, %p57
      %p59 = scmp.ne.s32.totalorder %s45, %s46
      %p60 = scmp.eq.s32.totalorder %s38, 11
      %p61 = por %p59, %p60
      %p63 = scmp.ne.s32.totalorder %s46, %s62
      %p64 = scmp.eq.s32.totalorder %s38, 0
      %p65 = por %p63, %p64
      %s66 = ssub.s32 %s32, %s39
      %p67 = scmp.eq.s32.totalorder %s66, 0
      %s69 = sadd.s32 %s68, 1
      %s70 = scalar_select %p67, %s68, %s69
      %p73 = pneg %p67
      %p74 = scmp.eq.s32.totalorder %s32, 11
      %p75 = por %p73, %p74
      %p76 = scmp.ne.s32.totalorder %s68, %s71
      %p77 = scmp.eq.s32.totalorder %s32, 0
      %p78 = por %p76, %p77
      %p79 = scmp.ne.s32.totalorder %s68, %s71
      %p80 = scmp.eq.s32.totalorder %s37, 11
      %p81 = por %p79, %p80
      %p82 = scmp.ne.s32.totalorder %s71, %s72
      %p83 = scmp.eq.s32.totalorder %s37, 0
      %p84 = por %p82, %p83
      %p85 = scmp.ne.s32.totalorder %s71, %s72
      %p86 = scmp.eq.s32.totalorder %s38, 11
      %p87 = por %p85, %p86
      %p89 = scmp.ne.s32.totalorder %s72, %s88
      %p90 = scmp.eq.s32.totalorder %s38, 0
      %p91 = por %p89, %p90
      %s92 = ssub.s32 %s32, %s39
      %p93 = scmp.eq.s32.totalorder %s92, 0
      %s95 = sadd.s32 %s94, 1
      %s96 = scalar_select %p93, %s94, %s95
      %p99 = pneg %p93
      %p100 = scmp.eq.s32.totalorder %s32, 11
      %p101 = por %p99, %p100
      %p102 = scmp.ne.s32.totalorder %s94, %s97
      %p103 = scmp.eq.s32.totalorder %s32, 0
      %p104 = por %p102, %p103
      %p105 = scmp.ne.s32.totalorder %s94, %s97
      %p106 = scmp.eq.s32.totalorder %s37, 11
      %p107 = por %p105, %p106
      %p108 = scmp.ne.s32.totalorder %s97, %s98
      %p109 = scmp.eq.s32.totalorder %s37, 0
      %p110 = por %p108, %p109
      %p111 = scmp.ne.s32.totalorder %s97, %s98
      %p112 = scmp.eq.s32.totalorder %s38, 11
      %p113 = por %p111, %p112
      %p115 = scmp.ne.s32.totalorder %s98, %s114
      %p116 = scmp.eq.s32.totalorder %s38, 0
      %p117 = por %p115, %p116
      %s119 = sadd.s32 %s118, 1
      %p122 = scmp.eq.s32.totalorder %s32, 11
      %p123 = scmp.ne.s32.totalorder %s118, %s120
      %p124 = scmp.eq.s32.totalorder %s32, 0
      %p125 = por %p123, %p124
      %p126 = scmp.ne.s32.totalorder %s118, %s120
      %p127 = scmp.eq.s32.totalorder %s37, 11
      %p128 = por %p126, %p127
      %p129 = scmp.ne.s32.totalorder %s120, %s121
      %p130 = scmp.eq.s32.totalorder %s37, 0
      %p131 = por %p129, %p130
      %p132 = scmp.ne.s32.totalorder %s120, %s121
      %p133 = scmp.eq.s32.totalorder %s38, 11
      %p134 = por %p132, %p133
      %p136 = scmp.ne.s32.totalorder %s121, %s135
      %p137 = scmp.eq.s32.totalorder %s38, 0
      %p138 = por %p136, %p137
      %s140 = sadd.s32 %s139, 1
      %p143 = scmp.eq.s32.totalorder %s32, 11
      %p144 = scmp.ne.s32.totalorder %s139, %s141
      %p145 = scmp.eq.s32.totalorder %s32, 0
      %p146 = por %p144, %p145
      %p147 = scmp.ne.s32.totalorder %s139, %s141
      %p148 = scmp.eq.s32.totalorder %s37, 11
      %p149 = por %p147, %p148
      %p150 = scmp.ne.s32.totalorder %s141, %s142
      %p151 = scmp.eq.s32.totalorder %s37, 0
      %p152 = por %p150, %p151
      %p153 = scmp.ne.s32.totalorder %s141, %s142
      %p154 = scmp.eq.s32.totalorder %s38, 11
      %p155 = por %p153, %p154
      %p157 = scmp.ne.s32.totalorder %s142, %s156
      %p158 = scmp.eq.s32.totalorder %s38, 0
      %p159 = por %p157, %p158
      %s161 = sadd.s32 %s160, 1
      %p164 = scmp.eq.s32.totalorder %s32, 11
      %p165 = scmp.ne.s32.totalorder %s160, %s162
      %p166 = scmp.eq.s32.totalorder %s32, 0
      %p167 = por %p165, %p166
      %p168 = scmp.ne.s32.totalorder %s160, %s162
      %p169 = scmp.eq.s32.totalorder %s37, 11
      %p170 = por %p168, %p169
      %p171 = scmp.ne.s32.totalorder %s162, %s163
      %p172 = scmp.eq.s32.totalorder %s37, 0
      %p173 = por %p171, %p172
      %p174 = scmp.ne.s32.totalorder %s162, %s163
      %p175 = scmp.eq.s32.totalorder %s38, 11
      %p176 = por %p174, %p175
      %p178 = scmp.ne.s32.totalorder %s163, %s177
      %p179 = scmp.eq.s32.totalorder %s38, 0
      %p180 = por %p178, %p179
      %s182 = sadd.s32 %s181, 1
      %p185 = scmp.eq.s32.totalorder %s32, 11
      %p186 = scmp.ne.s32.totalorder %s181, %s183
      %p187 = scmp.eq.s32.totalorder %s32, 0
      %p188 = por %p186, %p187
      %p189 = scmp.ne.s32.totalorder %s181, %s183
      %p190 = scmp.eq.s32.totalorder %s37, 11
      %p191 = por %p189, %p190
      %p192 = scmp.ne.s32.totalorder %s183, %s184
      %p193 = scmp.eq.s32.totalorder %s37, 0
      %p194 = por %p192, %p193
      %p195 = scmp.ne.s32.totalorder %s183, %s184
      %p196 = scmp.eq.s32.totalorder %s38, 11
      %p197 = por %p195, %p196
      %p199 = scmp.ne.s32.totalorder %s184, %s198
      %p200 = scmp.eq.s32.totalorder %s38, 0
      %p201 = por %p199, %p200
      %s203 = sadd.s32 %s202, 1
      %p206 = scmp.eq.s32.totalorder %s32, 11
      %p207 = scmp.ne.s32.totalorder %s202, %s204
      %p208 = scmp.eq.s32.totalorder %s32, 0
      %p209 = por %p207, %p208
      %p210 = scmp.ne.s32.totalorder %s202, %s204
      %p211 = scmp.eq.s32.totalorder %s37, 11
      %p212 = por %p210, %p211
      %p213 = scmp.ne.s32.totalorder %s204, %s205
      %p214 = scmp.eq.s32.totalorder %s37, 0
      %p215 = por %p213, %p214
      %p216 = scmp.ne.s32.totalorder %s204, %s205
      %p217 = scmp.eq.s32.totalorder %s38, 11
      %p218 = por %p216, %p217
      %p220 = scmp.ne.s32.totalorder %s205, %s219
      %p221 = scmp.eq.s32.totalorder %s38, 0
      %p222 = por %p220, %p221
      %s224 = sadd.s32 %s223, 1
      %p227 = scmp.eq.s32.totalorder %s32, 11
      %p228 = scmp.ne.s32.totalorder %s223, %s225
      %p229 = scmp.eq.s32.totalorder %s32, 0
      %p230 = por %p228, %p229
      %p231 = scmp.ne.s32.totalorder %s223, %s225
      %p232 = scmp.eq.s32.totalorder %s37, 11
      %p233 = por %p231, %p232
      %p234 = scmp.ne.s32.totalorder %s225, %s226
      %p235 = scmp.eq.s32.totalorder %s37, 0
      %p236 = por %p234, %p235
      %p237 = scmp.ne.s32.totalorder %s225, %s226
      %p238 = scmp.eq.s32.totalorder %s38, 11
      %p239 = por %p237, %p238
      %p241 = scmp.ne.s32.totalorder %s226, %s240
      %p242 = scmp.eq.s32.totalorder %s38, 0
      %p243 = por %p241, %p242
      %s245 = sadd.s32 %s244, 1
      %p248 = scmp.eq.s32.totalorder %s32, 11
      %p249 = scmp.ne.s32.totalorder %s244, %s246
      %p250 = scmp.eq.s32.totalorder %s32, 0
      %p251 = por %p249, %p250
      %p252 = scmp.ne.s32.totalorder %s244, %s246
      %p253 = scmp.eq.s32.totalorder %s37, 11
      %p254 = por %p252, %p253
      %p255 = scmp.ne.s32.totalorder %s246, %s247
      %p256 = scmp.eq.s32.totalorder %s37, 0
      %p257 = por %p255, %p256
      %p258 = scmp.ne.s32.totalorder %s246, %s247
      %p259 = scmp.eq.s32.totalorder %s38, 11
      %p260 = por %p258, %p259
      %p262 = scmp.ne.s32.totalorder %s247, %s261
      %p263 = scmp.eq.s32.totalorder %s38, 0
      %p264 = por %p262, %p263
      %s266 = sadd.s32 %s265, 1
      %p269 = scmp.eq.s32.totalorder %s32, 11
      %p270 = scmp.ne.s32.totalorder %s265, %s267
      %p271 = scmp.eq.s32.totalorder %s32, 0
      %p272 = por %p270, %p271
      %p273 = scmp.ne.s32.totalorder %s265, %s267
      %p274 = scmp.eq.s32.totalorder %s37, 11
      %p275 = por %p273, %p274
      %p276 = scmp.ne.s32.totalorder %s267, %s268
      %p277 = scmp.eq.s32.totalorder %s37, 0
      %p278 = por %p276, %p277
      %p279 = scmp.ne.s32.totalorder %s267, %s268
      %p280 = scmp.eq.s32.totalorder %s38, 11
      %p281 = por %p279, %p280
      %p283 = scmp.ne.s32.totalorder %s268, %s282
      %p284 = scmp.eq.s32.totalorder %s38, 0
      %p285 = por %p283, %p284
      %s287 = sadd.s32 %s286, 1
      %p290 = scmp.eq.s32.totalorder %s32, 11
      %p291 = scmp.ne.s32.totalorder %s286, %s288
      %p292 = scmp.eq.s32.totalorder %s32, 0
      %p293 = por %p291, %p292
      %p294 = scmp.ne.s32.totalorder %s286, %s288
      %p295 = scmp.eq.s32.totalorder %s37, 11
      %p296 = por %p294, %p295
      %p297 = scmp.ne.s32.totalorder %s288, %s289
      %p298 = scmp.eq.s32.totalorder %s37, 0
      %p299 = por %p297, %p298
      %p300 = scmp.ne.s32.totalorder %s288, %s289
      %p301 = scmp.eq.s32.totalorder %s38, 11
      %p302 = por %p300, %p301
      %p304 = scmp.ne.s32.totalorder %s289, %s303
      %p305 = scmp.eq.s32.totalorder %s38, 0
      %p306 = por %p304, %p305
      %s308 = sadd.s32 %s307, 1
      %p311 = scmp.eq.s32.totalorder %s32, 11
      %p312 = scmp.ne.s32.totalorder %s307, %s309
      %p313 = scmp.eq.s32.totalorder %s32, 0
      %p314 = por %p312, %p313
      %p315 = scmp.ne.s32.totalorder %s307, %s309
      %p316 = scmp.eq.s32.totalorder %s37, 11
      %p317 = por %p315, %p316
      %p318 = scmp.ne.s32.totalorder %s309, %s310
      %p319 = scmp.eq.s32.totalorder %s37, 0
      %p320 = por %p318, %p319
      %p321 = scmp.ne.s32.totalorder %s309, %s310
      %p322 = scmp.eq.s32.totalorder %s38, 11
      %p323 = por %p321, %p322
      %p325 = scmp.ne.s32.totalorder %s310, %s324
      %p326 = scmp.eq.s32.totalorder %s38, 0
      %p327 = por %p325, %p326
      %s329 = sadd.s32 %s328, 1
      %p332 = scmp.eq.s32.totalorder %s32, 11
      %p333 = scmp.ne.s32.totalorder %s328, %s330
      %p334 = scmp.eq.s32.totalorder %s32, 0
      %p335 = por %p333, %p334
      %p336 = scmp.ne.s32.totalorder %s328, %s330
      %p337 = scmp.eq.s32.totalorder %s37, 11
      %p338 = por %p336, %p337
      %p339 = scmp.ne.s32.totalorder %s330, %s331
      %p340 = scmp.eq.s32.totalorder %s37, 0
      %p341 = por %p339, %p340
      %p342 = scmp.ne.s32.totalorder %s330, %s331
      %p343 = scmp.eq.s32.totalorder %s38, 11
      %p344 = por %p342, %p343
      %p346 = scmp.ne.s32.totalorder %s331, %s345
      %p347 = scmp.eq.s32.totalorder %s38, 0
      %p348 = por %p346, %p347
      %s350 = sadd.s32 %s349, 1
      %p353 = scmp.eq.s32.totalorder %s32, 11
      %p354 = scmp.ne.s32.totalorder %s349, %s351
      %p355 = scmp.eq.s32.totalorder %s32, 0
      %p356 = por %p354, %p355
      %p357 = scmp.ne.s32.totalorder %s349, %s351
      %p358 = scmp.eq.s32.totalorder %s37, 11
      %p359 = por %p357, %p358
      %p360 = scmp.ne.s32.totalorder %s351, %s352
      %p361 = scmp.eq.s32.totalorder %s37, 0
      %p362 = por %p360, %p361
      %p363 = scmp.ne.s32.totalorder %s351, %s352
      %p364 = scmp.eq.s32.totalorder %s38, 11
      %p365 = por %p363, %p364
      %p367 = scmp.ne.s32.totalorder %s352, %s366
      %p368 = scmp.eq.s32.totalorder %s38, 0
      %p369 = por %p367, %p368
      %s371 = sadd.s32 %s370, 1
      %p374 = scmp.eq.s32.totalorder %s32, 11
      %p375 = scmp.ne.s32.totalorder %s370, %s372
      %p376 = scmp.eq.s32.totalorder %s32, 0
      %p377 = por %p375, %p376
      %p378 = scmp.ne.s32.totalorder %s370, %s372
      %p379 = scmp.eq.s32.totalorder %s37, 11
      %p380 = por %p378, %p379
      %p381 = scmp.ne.s32.totalorder %s372, %s373
      %p382 = scmp.eq.s32.totalorder %s37, 0
      %p383 = por %p381, %p382
      %p384 = scmp.ne.s32.totalorder %s372, %s373
      %p385 = scmp.eq.s32.totalorder %s38, 11
      %p386 = por %p384, %p385
      %p388 = scmp.ne.s32.totalorder %s373, %s387
      %p389 = scmp.eq.s32.totalorder %s38, 0
      %p390 = por %p388, %p389
      %s392 = sadd.s32 %s391, 1
      %p395 = scmp.eq.s32.totalorder %s32, 11
      %p396 = scmp.ne.s32.totalorder %s391, %s393
      %p397 = scmp.eq.s32.totalorder %s32, 0
      %p398 = por %p396, %p397
      %p399 = scmp.ne.s32.totalorder %s391, %s393
      %p400 = scmp.eq.s32.totalorder %s37, 11
      %p401 = por %p399, %p400
      %p402 = scmp.ne.s32.totalorder %s393, %s394
      %p403 = scmp.eq.s32.totalorder %s37, 0
      %p404 = por %p402, %p403
      %p405 = scmp.ne.s32.totalorder %s393, %s394
      %p406 = scmp.eq.s32.totalorder %s38, 11
      %p407 = por %p405, %p406
      %p409 = scmp.ne.s32.totalorder %s394, %s408
      %p410 = scmp.eq.s32.totalorder %s38, 0
      %p411 = por %p409, %p410
      %s413 = sadd.s32 %s412, 1
      %p416 = scmp.eq.s32.totalorder %s32, 11
      %p417 = scmp.ne.s32.totalorder %s412, %s414
      %p418 = scmp.eq.s32.totalorder %s32, 0
      %p419 = por %p417, %p418
      %p420 = scmp.ne.s32.totalorder %s412, %s414
      %p421 = scmp.eq.s32.totalorder %s37, 11
      %p422 = por %p420, %p421
      %p423 = scmp.ne.s32.totalorder %s414, %s415
      %p424 = scmp.eq.s32.totalorder %s37, 0
      %p425 = por %p423, %p424
      %p426 = scmp.ne.s32.totalorder %s414, %s415
      %p427 = scmp.eq.s32.totalorder %s38, 11
      %p428 = por %p426, %p427
      %p430 = scmp.ne.s32.totalorder %s415, %s429
      %p431 = scmp.eq.s32.totalorder %s38, 0
      %p432 = por %p430, %p431
      %s434 = sadd.s32 %s433, 1
      %p437 = scmp.eq.s32.totalorder %s32, 11
      %p438 = scmp.ne.s32.totalorder %s433, %s435
      %p439 = scmp.eq.s32.totalorder %s32, 0
      %p440 = por %p438, %p439
      %p441 = scmp.ne.s32.totalorder %s433, %s435
      %p442 = scmp.eq.s32.totalorder %s37, 11
      %p443 = por %p441, %p442
      %p444 = scmp.ne.s32.totalorder %s435, %s436
      %p445 = scmp.eq.s32.totalorder %s37, 0
      %p446 = por %p444, %p445
      %p447 = scmp.ne.s32.totalorder %s435, %s436
      %p448 = scmp.eq.s32.totalorder %s38, 11
      %p449 = por %p447, %p448
      %p451 = scmp.ne.s32.totalorder %s436, %s450
      %p452 = scmp.eq.s32.totalorder %s38, 0
      %p453 = por %p451, %p452
      %s455 = sadd.s32 %s454, 1
      %p458 = scmp.eq.s32.totalorder %s32, 11
      %p459 = scmp.ne.s32.totalorder %s454, %s456
      %p460 = scmp.eq.s32.totalorder %s32, 0
      %p461 = por %p459, %p460
      %p462 = scmp.ne.s32.totalorder %s454, %s456
      %p463 = scmp.eq.s32.totalorder %s37, 11
      %p464 = por %p462, %p463
      %p465 = scmp.ne.s32.totalorder %s456, %s457
      %p466 = scmp.eq.s32.totalorder %s37, 0
      %p467 = por %p465, %p466
      %p468 = scmp.ne.s32.totalorder %s456, %s457
      %p469 = scmp.eq.s32.totalorder %s38, 11
      %p470 = por %p468, %p469
      %p472 = scmp.ne.s32.totalorder %s457, %s471
      %p473 = scmp.eq.s32.totalorder %s38, 0
      %p474 = por %p472, %p473
      %s476 = sadd.s32 %s475, 1
      %p479 = scmp.eq.s32.totalorder %s32, 11
      %p480 = scmp.ne.s32.totalorder %s475, %s477
      %p481 = scmp.eq.s32.totalorder %s32, 0
      %p482 = por %p480, %p481
      %p483 = scmp.ne.s32.totalorder %s475, %s477
      %p484 = scmp.eq.s32.totalorder %s37, 11
      %p485 = por %p483, %p484
      %p486 = scmp.ne.s32.totalorder %s477, %s478
      %p487 = scmp.eq.s32.totalorder %s37, 0
      %p488 = por %p486, %p487
      %p489 = scmp.ne.s32.totalorder %s477, %s478
      %p490 = scmp.eq.s32.totalorder %s38, 11
      %p491 = por %p489, %p490
      %p493 = scmp.ne.s32.totalorder %s478, %s492
      %p494 = scmp.eq.s32.totalorder %s38, 0
      %p495 = por %p493, %p494
      %s496 = ssub.s32 %s32, %s39
      %p497 = scmp.eq.s32.totalorder %s496, 0
      %s499 = sadd.s32 %s498, 1
      %s500 = scalar_select %p497, %s498, %s499
      %p503 = pneg %p497
      %p504 = scmp.eq.s32.totalorder %s32, 11
      %p505 = por %p503, %p504
      %p506 = scmp.ne.s32.totalorder %s498, %s501
      %p507 = scmp.eq.s32.totalorder %s32, 0
      %p508 = por %p506, %p507
      %p509 = scmp.ne.s32.totalorder %s498, %s501
      %p510 = scmp.eq.s32.totalorder %s37, 11
      %p511 = por %p509, %p510
      %p512 = scmp.ne.s32.totalorder %s501, %s502
      %p513 = scmp.eq.s32.totalorder %s37, 0
      %p514 = por %p512, %p513
      %p515 = scmp.ne.s32.totalorder %s501, %s502
      %p516 = scmp.eq.s32.totalorder %s38, 11
      %p517 = por %p515, %p516
      %p519 = scmp.ne.s32.totalorder %s502, %s518
      %p520 = scmp.eq.s32.totalorder %s38, 0
      %p521 = por %p519, %p520
      %s522 = ssub.s32 %s32, %s39
      %p523 = scmp.eq.s32.totalorder %s522, 0
      %s525 = sadd.s32 %s524, 1
      %s526 = scalar_select %p523, %s524, %s525
      %p529 = pneg %p523
      %p530 = scmp.eq.s32.totalorder %s32, 11
      %p531 = por %p529, %p530
      %p532 = scmp.ne.s32.totalorder %s524, %s527
      %p533 = scmp.eq.s32.totalorder %s32, 0
      %p534 = por %p532, %p533
      %p535 = scmp.ne.s32.totalorder %s524, %s527
      %p536 = scmp.eq.s32.totalorder %s37, 11
      %p537 = por %p535, %p536
      %p538 = scmp.ne.s32.totalorder %s527, %s528
      %p539 = scmp.eq.s32.totalorder %s37, 0
      %p540 = por %p538, %p539
      %p541 = scmp.ne.s32.totalorder %s527, %s528
      %p542 = scmp.eq.s32.totalorder %s38, 11
      %p543 = por %p541, %p542
      %p545 = scmp.ne.s32.totalorder %s528, %s544
      %p546 = scmp.eq.s32.totalorder %s38, 0
      %p547 = por %p545, %p546
      %p548 = scmp.le.s32.totalorder 1, %s32
      %p549 = scmp.lt.s32.totalorder %s32, 13
      %p550 = pnand %p548, %p549
      %p551 = pneg %p550
      // Predicated region
      $region9: #{tpu_custom_call.1} parent=5 // pred_check
        _
      $region10: #{tpu_custom_call.1} parent=5 // pred_check_branch
        %553 = sbr.rel (%p550) target = $region12
      $region11: #{tpu_custom_call.1} parent=5 // pred_region
        %s554 = ssub.s32 %s32, 1
        // Predicated region
        $region13: #{tpu_custom_call.1} parent=11 // pred_check
          %p555 = pneg %p131
        $region14: #{tpu_custom_call.1} parent=11 // pred_check_branch
          %557 = sbr.rel (%p555) target = $region16
        $region15: #{tpu_custom_call.1} parent=11 // pred_region
          _
        $region16: #{tpu_custom_call.1} parent=11 // pred_fallthru
          _
        // Predicated region
        $region17: #{tpu_custom_call.1} parent=11 // pred_check
          %p558 = pneg %p152
        $region18: #{tpu_custom_call.1} parent=11 // pred_check_branch
          %560 = sbr.rel (%p558) target = $region20
        $region19: #{tpu_custom_call.1} parent=11 // pred_region
          _
        $region20: #{tpu_custom_call.1} parent=11 // pred_fallthru
          _
        // Predicated region
        $region21: #{tpu_custom_call.1} parent=11 // pred_check
          %p561 = pneg %p173
        $region22: #{tpu_custom_call.1} parent=11 // pred_check_branch
          %563 = sbr.rel (%p561) target = $region24
        $region23: #{tpu_custom_call.1} parent=11 // pred_region
          _
        $region24: #{tpu_custom_call.1} parent=11 // pred_fallthru
          _
        // Predicated region
        $region25: #{tpu_custom_call.1} parent=11 // pred_check
          %p564 = pneg %p194
        $region26: #{tpu_custom_call.1} parent=11 // pred_check_branch
          %566 = sbr.rel (%p564) target = $region28
        $region27: #{tpu_custom_call.1} parent=11 // pred_region
          _
        $region28: #{tpu_custom_call.1} parent=11 // pred_fallthru
          _
        // Predicated region
        $region29: #{tpu_custom_call.1} parent=11 // pred_check
          %p567 = pneg %p215
        $region30: #{tpu_custom_call.1} parent=11 // pred_check_branch
          %569 = sbr.rel (%p567) target = $region32
        $region31: #{tpu_custom_call.1} parent=11 // pred_region
          _
        $region32: #{tpu_custom_call.1} parent=11 // pred_fallthru
          _
        // Predicated region
        $region33: #{tpu_custom_call.1} parent=11 // pred_check
          %p570 = pneg %p236
        $region34: #{tpu_custom_call.1} parent=11 // pred_check_branch
          %572 = sbr.rel (%p570) target = $region36
        $region35: #{tpu_custom_call.1} parent=11 // pred_region
          _
        $region36: #{tpu_custom_call.1} parent=11 // pred_fallthru
          _
        // Predicated region
        $region37: #{tpu_custom_call.1} parent=11 // pred_check
          %p573 = pneg %p257
        $region38: #{tpu_custom_call.1} parent=11 // pred_check_branch
          %575 = sbr.rel (%p573) target = $region40
        $region39: #{tpu_custom_call.1} parent=11 // pred_region
          _
        $region40: #{tpu_custom_call.1} parent=11 // pred_fallthru
          _
        // Predicated region
        $region41: #{tpu_custom_call.1} parent=11 // pred_check
          %p576 = pneg %p278
        $region42: #{tpu_custom_call.1} parent=11 // pred_check_branch
          %578 = sbr.rel (%p576) target = $region44
        $region43: #{tpu_custom_call.1} parent=11 // pred_region
          _
        $region44: #{tpu_custom_call.1} parent=11 // pred_fallthru
          _
        // Predicated region
        $region45: #{tpu_custom_call.1} parent=11 // pred_check
          %p579 = pneg %p299
        $region46: #{tpu_custom_call.1} parent=11 // pred_check_branch
          %581 = sbr.rel (%p579) target = $region48
        $region47: #{tpu_custom_call.1} parent=11 // pred_region
          _
        $region48: #{tpu_custom_call.1} parent=11 // pred_fallthru
          _
        // Predicated region
        $region49: #{tpu_custom_call.1} parent=11 // pred_check
          %p582 = pneg %p320
        $region50: #{tpu_custom_call.1} parent=11 // pred_check_branch
          %584 = sbr.rel (%p582) target = $region52
        $region51: #{tpu_custom_call.1} parent=11 // pred_region
          _
        $region52: #{tpu_custom_call.1} parent=11 // pred_fallthru
          _
        // Predicated region
        $region53: #{tpu_custom_call.1} parent=11 // pred_check
          %p585 = pneg %p341
        $region54: #{tpu_custom_call.1} parent=11 // pred_check_branch
          %587 = sbr.rel (%p585) target = $region56
        $region55: #{tpu_custom_call.1} parent=11 // pred_region
          _
        $region56: #{tpu_custom_call.1} parent=11 // pred_fallthru
          _
        // Predicated region
        $region57: #{tpu_custom_call.1} parent=11 // pred_check
          %p588 = pneg %p362
        $region58: #{tpu_custom_call.1} parent=11 // pred_check_branch
          %590 = sbr.rel (%p588) target = $region60
        $region59: #{tpu_custom_call.1} parent=11 // pred_region
          _
        $region60: #{tpu_custom_call.1} parent=11 // pred_fallthru
          _
        // Predicated region
        $region61: #{tpu_custom_call.1} parent=11 // pred_check
          %p591 = pneg %p383
        $region62: #{tpu_custom_call.1} parent=11 // pred_check_branch
          %593 = sbr.rel (%p591) target = $region64
        $region63: #{tpu_custom_call.1} parent=11 // pred_region
          _
        $region64: #{tpu_custom_call.1} parent=11 // pred_fallthru
          _
        // Predicated region
        $region65: #{tpu_custom_call.1} parent=11 // pred_check
          %p594 = pneg %p404
        $region66: #{tpu_custom_call.1} parent=11 // pred_check_branch
          %596 = sbr.rel (%p594) target = $region68
        $region67: #{tpu_custom_call.1} parent=11 // pred_region
          _
        $region68: #{tpu_custom_call.1} parent=11 // pred_fallthru
          _
        // Predicated region
        $region69: #{tpu_custom_call.1} parent=11 // pred_check
          %p597 = pneg %p425
        $region70: #{tpu_custom_call.1} parent=11 // pred_check_branch
          %599 = sbr.rel (%p597) target = $region72
        $region71: #{tpu_custom_call.1} parent=11 // pred_region
          _
        $region72: #{tpu_custom_call.1} parent=11 // pred_fallthru
          _
        // Predicated region
        $region73: #{tpu_custom_call.1} parent=11 // pred_check
          %p600 = pneg %p446
        $region74: #{tpu_custom_call.1} parent=11 // pred_check_branch
          %602 = sbr.rel (%p600) target = $region76
        $region75: #{tpu_custom_call.1} parent=11 // pred_region
          _
        $region76: #{tpu_custom_call.1} parent=11 // pred_fallthru
          _
        // Predicated region
        $region77: #{tpu_custom_call.1} parent=11 // pred_check
          %p603 = pneg %p467
        $region78: #{tpu_custom_call.1} parent=11 // pred_check_branch
          %605 = sbr.rel (%p603) target = $region80
        $region79: #{tpu_custom_call.1} parent=11 // pred_region
          _
        $region80: #{tpu_custom_call.1} parent=11 // pred_fallthru
          _
        // Predicated region
        $region81: #{tpu_custom_call.1} parent=11 // pred_check
          %p606 = pneg %p488
        $region82: #{tpu_custom_call.1} parent=11 // pred_check_branch
          %608 = sbr.rel (%p606) target = $region84
        $region83: #{tpu_custom_call.1} parent=11 // pred_region
          _
        $region84: #{tpu_custom_call.1} parent=11 // pred_fallthru
          _
      $region12: #{tpu_custom_call.1} parent=5 // pred_fallthru
        _
      %p609 = scmp.lt.s32.totalorder %s32, 12
      // Predicated region
      $region85: #{tpu_custom_call.1} parent=5 // pred_check
        %p610 = pneg %p609
      $region86: #{tpu_custom_call.1} parent=5 // pred_check_branch
        %612 = sbr.rel (%p610) target = $region88
      $region87: #{tpu_custom_call.1} parent=5 // pred_region
        // Predicated region
        $region89: #{tpu_custom_call.1} parent=87 // pred_check
          %p613 = pneg %p52
        $region90: #{tpu_custom_call.1} parent=87 // pred_check_branch
          %615 = sbr.rel (%p613) target = $region92
        $region91: #{tpu_custom_call.1} parent=87 // pred_region
          %p616 = scmp.lt.s32.totalorder %s32, 11
          %s617 = scalar_select %p616, %s32, 11
          %s618 = smul.addr %s617, 2
          %s619 = smul.addr %s618, 8
          %s620 = scalar_lea.vmem %s0, %s619
        $region92: #{tpu_custom_call.1} parent=87 // pred_fallthru
          _
        // Predicated region
        $region93: #{tpu_custom_call.1} parent=87 // pred_check
          %p621 = pneg %p78
        $region94: #{tpu_custom_call.1} parent=87 // pred_check_branch
          %623 = sbr.rel (%p621) target = $region96
        $region95: #{tpu_custom_call.1} parent=87 // pred_region
          %p624 = scmp.lt.s32.totalorder %s32, 11
          %s625 = scalar_select %p624, %s32, 11
          %s626 = smul.addr %s625, 2
          %s627 = smul.addr %s626, 4
          %s628 = scalar_lea.vmem %s1, %s627
        $region96: #{tpu_custom_call.1} parent=87 // pred_fallthru
          _
        // Predicated region
        $region97: #{tpu_custom_call.1} parent=87 // pred_check
          %p629 = pneg %p104
        $region98: #{tpu_custom_call.1} parent=87 // pred_check_branch
          %631 = sbr.rel (%p629) target = $region100
        $region99: #{tpu_custom_call.1} parent=87 // pred_region
          %p632 = scmp.lt.s32.totalorder %s32, 11
          %s633 = scalar_select %p632, %s32, 11
          %s634 = scalar_lea.vmem %s2, %s633
        $region100: #{tpu_custom_call.1} parent=87 // pred_fallthru
          _
      $region88: #{tpu_custom_call.1} parent=5 // pred_fallthru
        _
      %p635 = scmp.le.s32.totalorder 1, %s32
      %p636 = scmp.lt.s32.totalorder %s32, 13
      %p637 = pnand %p635, %p636
      %p638 = pneg %p637
      // Predicated region
      $region101: #{tpu_custom_call.1} parent=5 // pred_check
        _
      $region102: #{tpu_custom_call.1} parent=5 // pred_check_branch
        %640 = sbr.rel (%p637) target = $region104
      $region103: #{tpu_custom_call.1} parent=5 // pred_region
        %s641 = ssub.s32 %s32, 1
        %p642 = scmp.lt.s32.totalorder %s37, 11
        %s643 = scalar_select %p642, %s37, 11
        %s644 = smul.addr %s643, 2
        %s645 = smul.addr %s644, 8
        %s646 = scalar_lea.vmem %s0, %s645
        %p647 = pneg %p58
        %p648 = pneg %p55
        %p649 = scmp.lt.s32.totalorder %s37, 11
        %s650 = scalar_select %p649, %s37, 11
        %s651 = smul.addr %s650, 2
        %s652 = smul.addr %s651, 4
        %s653 = scalar_lea.vmem %s1, %s652
        %p654 = pneg %p84
        %p655 = pneg %p81
        %p656 = scmp.lt.s32.totalorder %s37, 11
        %s657 = scalar_select %p656, %s37, 11
        %s658 = scalar_lea.vmem %s2, %s657
        %p659 = pneg %p110
        %p660 = pneg %p107
        %p661 = pneg %p131
        %p662 = pneg %p128
        %p663 = pneg %p152
        %p664 = pneg %p149
        %p665 = pneg %p173
        %p666 = pneg %p170
        %p667 = pneg %p194
        %p668 = pneg %p191
        %p669 = pneg %p215
        %p670 = pneg %p212
        %p671 = pneg %p236
        %p672 = pneg %p233
        %p673 = pneg %p257
        %p674 = pneg %p254
        %p675 = pneg %p278
        %p676 = pneg %p275
        %p677 = pneg %p299
        %p678 = pneg %p296
        %p679 = pneg %p320
        %p680 = pneg %p317
        %p681 = pneg %p341
        %p682 = pneg %p338
        %p683 = pneg %p362
        %p684 = pneg %p359
        %p685 = pneg %p383
        %p686 = pneg %p380
        %p687 = pneg %p404
        %p688 = pneg %p401
        %p689 = pneg %p425
        %p690 = pneg %p422
        %p691 = pneg %p446
        %p692 = pneg %p443
        %p693 = pneg %p467
        %p694 = pneg %p464
        %p695 = pneg %p488
        %p696 = pneg %p485
        %p697 = pneg %p514
        %p698 = pneg %p511
        %s699 = sand.u32 %s501, 1
        %s700 = scalar_lea.sflag [#allocation4], %s699
        %s701 = sand.u32 %s501, 1
        %s702 = scalar_lea.vmem [#allocation3], %s701
        %p703 = pneg %p540
        %p704 = pneg %p537
        %p705 = scmp.lt.s32.totalorder %s37, 11
        %s706 = scalar_select %p705, %s37, 11
        %s707 = smul.addr %s706, 2
        %s708 = smul.addr %s707, 8
        %s709 = scalar_lea.vmem %s22, %s708
        %p710 = scmp.lt.s32.totalorder %s37, 11
        %s711 = scalar_select %p710, %s37, 11
        %s712 = smul.addr %s711, 2
        %s713 = smul.addr %s712, 8
        %s714 = scalar_lea.vmem %s0, %s713
        %p715 = scmp.lt.s32.totalorder %s37, 11
        %s716 = scalar_select %p715, %s37, 11
        %s717 = smul.addr %s716, 2
        %s718 = smul.addr %s717, 4
        %s719 = scalar_lea.vmem %s1, %s718
        %p720 = scmp.lt.s32.totalorder %s37, 11
        %s721 = scalar_select %p720, %s37, 11
        %s722 = scalar_lea.vmem %s2, %s721
        %p723 = scmp.lt.s32.totalorder %s37, 11
        %s724 = scalar_select %p723, %s37, 11
        %s725 = smul.addr %s724, 2
        %s726 = smul.addr %s725, 8
        %s727 = scalar_lea.vmem %s22, %s726
        %v729 = vld [vmem:[%s722] sm:$0x1]
        %v730 = vld [vmem:[%s719] sm:$0xf]
        %v731 = vld [vmem:[%s719 + $0x4] sm:$0xf]
        %v732 = vunpack.c.l.bf16 %v730
        %v733 = vunpack.c.l.bf16 %v731
        %v734 = vld [vmem:[%s714] sm:$0xff]
        %v735 = vld [vmem:[%s714 + $0x8] sm:$0xff]
        %v736 = vpack.c.bf16 %v735, %v734
        %v737 = vld [vmem:[%s3] sm:$0xf]
        %v738 = vld [vmem:[%s4] sm:$0x1]
        %v740 = vperm.slane %v738, 0
        %vm742 = vcmask 64512
        %v744 = vsel %vm742, %v736, 0
        %vm746 = vcmask 1043456
        %v748 = vsel %vm746, %v737, 0
        %750 = vmatpush.bf16.msra.mxu0 0
        %751 = vmatpush.bf16.msra.mxu0 0
        %752 = vmatpush.bf16.msra.mxu0 0
        %753 = vmatpush.bf16.msra.mxu0 0
        %754 = vmatpush.bf16.msra.mxu0 0
        %755 = vmatpush.bf16.msra.mxu0 0
        %756 = vmatpush.bf16.msra.mxu0 0
        %757 = vmatpush.bf16.msra.mxu0 %v748
        %758 = vmatmul.bf16.gmra.mxu0 %v744
        %v759 = vpop.f32.mrf.mxu0
        %v760 = vadd.f32 %v740, %v759
        %v761 = vpop.f32.mrf.mxu0
        %v762 = vadd.f32 %v740, %v761
        %763 = vdwg.mxu0
        %vm764 = vcmask 261120
        %765 = vst.msk [vmem:[#allocation2] sm:$0xff] %vm764, %v760
        %766 = vst.msk [vmem:[#allocation2 + $0x8] sm:$0xff] %vm764, %v762
        loop: start=0, step=1, limit=2
        $region105: #{tpu_custom_call.1} parent=103 // loop_pre_header
          _
        $region106: #{tpu_custom_call.1} parent=103 // loop_header
          %s768 = sphi 0, %s772
          %p769 = scmp.ge.s32.totalorder %s768, 2
        $region107: #{tpu_custom_call.1} parent=103 // loop_header_branch
          %771 = sbr.rel (%p769) target = $region111
        $region108: #{tpu_custom_call.1} parent=103 // loop_body
          %v773 = vld [vmem:[#allocation2] sm:$0xff]
          %v774 = vld [vmem:[#allocation2 + $0x8] sm:$0xff]
          %v775 = vadd.f32 %v773, %v732
          %v776 = vadd.f32 %v774, %v733
          %v777 = vpack.c.bf16 %v776, %v775
          %s778 = smul.u32 %s768, 4
          %s779 = smul.addr %s778, 4
          %s780 = scalar_lea.vmem %s5, %s779
          %v781 = vld [vmem:[%s780] sm:$0xf]
          %v782 = vld [vmem:[%s780 + $0x4] sm:$0xf]
          %v783 = vld [vmem:[%s780 + $0x8] sm:$0xf]
          %v784 = vld [vmem:[%s780 + $0xc] sm:$0xf]
          %s785 = scalar_lea.vmem %s6, %s768
          %v786 = vld [vmem:[%s785] sm:$0x1]
          %v788 = vperm.slane %v786, 0
          %v794 = vunpack.c.l.b16 %v781
          %v795 = vunpack.c.l.b16 %v782
          %v796 = vunpack.c.l.b16 %v783
          %v797 = vunpack.c.l.b16 %v784
          %v798 = vpack.c.b16 %v795, %v794
          %v799 = vpack.c.b16 %v797, %v796
          %v803 = vsel %vm764, %v777, 0
          %805 = vmatpush.bf16.msra.mxu0 0
          %806 = vmatpush.bf16.msra.mxu0 0
          %807 = vmatpush.bf16.msra.mxu0 0
          %808 = vmatpush.bf16.msra.mxu0 0
          %809 = vmatpush.bf16.msra.mxu0 0
          %810 = vmatpush.bf16.msra.mxu0 0
          %811 = vmatpush.bf16.msra.mxu0 %v799
          %812 = vmatpush.bf16.msra.mxu0 %v798
          %813 = vmatmul.bf16.gmra.mxu0 %v803
          %v814 = vpop.f32.mrf.mxu0
          %v815 = vadd.f32 %v788, %v814
          %v816 = vpop.f32.mrf.mxu0
          %v817 = vadd.f32 %v788, %v816
          %818 = vdwg.mxu0
          %v819 = vpack.c.bf16 %v774, %v773
          %s820 = smul.addr %s778, 4
          %s821 = scalar_lea.vmem %s7, %s820
          %v822 = vld [vmem:[%s821] sm:$0xf]
          %v823 = vld [vmem:[%s821 + $0x4] sm:$0xf]
          %v824 = vld [vmem:[%s821 + $0x8] sm:$0xf]
          %v825 = vld [vmem:[%s821 + $0xc] sm:$0xf]
          %s826 = scalar_lea.vmem %s8, %s768
          %v827 = vld [vmem:[%s826] sm:$0x1]
          %v829 = vperm.slane %v827, 0
          %v835 = vunpack.c.l.b16 %v822
          %v836 = vunpack.c.l.b16 %v823
          %v837 = vunpack.c.l.b16 %v824
          %v838 = vunpack.c.l.b16 %v825
          %v839 = vpack.c.b16 %v836, %v835
          %v840 = vpack.c.b16 %v838, %v837
          %v844 = vsel %vm764, %v819, 0
          %846 = vmatpush.bf16.msra.mxu0 0
          %847 = vmatpush.bf16.msra.mxu0 0
          %848 = vmatpush.bf16.msra.mxu0 0
          %849 = vmatpush.bf16.msra.mxu0 0
          %850 = vmatpush.bf16.msra.mxu0 0
          %851 = vmatpush.bf16.msra.mxu0 0
          %852 = vmatpush.bf16.msra.mxu0 %v840
          %853 = vmatpush.bf16.msra.mxu0 %v839
          %854 = vmatmul.bf16.gmra.mxu0 %v844
          %v855 = vpop.f32.mrf.mxu0
          %v856 = vadd.f32 %v829, %v855
          %v857 = vpop.f32.mrf.mxu0
          %v858 = vadd.f32 %v829, %v857
          %859 = vdwg.mxu0
          %v860 = vpack.c.bf16 %v817, %v815
          %v861 = vpack.c.bf16 %v858, %v856
          %863 = vrot.lane.b32.xlu0 %v860, 96
          %v864 = vpop.permute.xlu0 %863
          %v866 = vsel %vm742, %v860, 0
          %v869 = vsel %vm742, %v864, 0
          %871 = vmatpush.bf16.xpose.msra.mxu0 0
          %872 = vmatpush.bf16.xpose.msra.mxu0 0
          %873 = vmatpush.bf16.xpose.msra.mxu0 0
          %874 = vmatpush.bf16.xpose.msra.mxu0 0
          %875 = vmatpush.bf16.xpose.msra.mxu0 0
          %876 = vmatpush.bf16.xpose.msra.mxu0 0
          %877 = vmatpush.bf16.xpose.msra.mxu0 0
          %878 = vmatpush.bf16.xpose.msra.mxu0 %v869
          %879 = vmatmul.bf16.gmra.mxu0 %v866
          %v880 = vpop.f32.mrf.mxu0
          %v881 = vadd.f32 0.0, %v880
          %v882 = vpop.f32.mrf.mxu0
          %v883 = vadd.f32 0.0, %v882
          %884 = vdwg.mxu0
          %v885 = vmul.f32 %v881, 0.35355338
          %v886 = vmul.f32 %v883, 0.35355338
          %v888 = vperm.slane %v729, 0
          %v890 = vadd.f32 %v885, %v888
          %v891 = vadd.f32 %v886, %v888
          %vm892 = vcmask 130048
          %v893 = vsel %vm892, %v890, -inf
          %894 = vmax.xlane.f32.xlu0 %v893
          %v895 = vpop.xlane.xlu0 %894
          %v896 = vsel %vm892, %v891, -inf
          %897 = vmax.xlane.f32.xlu0 %v896
          %v898 = vpop.xlane.xlu0 %897
          %v899 = vsub.f32 %v890, %v895
          %v900 = vsub.f32 %v891, %v898
          %v901 = vmul.f32 %v899, 1.442695
          %v902 = vpow.pop %v901
          %v903 = vmul.f32 %v900, 1.442695
          %v904 = vpow.pop %v903
          %v905 = vsel %vm892, %v902, 0.0
          %906 = vadd.xlane.f32.xlu0 %v905
          %v907 = vpop.xlane.xlu0 %906
          %v908 = vsel %vm892, %v904, 0.0
          %909 = vadd.xlane.f32.xlu0 %v908
          %v910 = vpop.xlane.xlu0 %909
          %v911 = vrcp.pop %v907
          %v912 = vmul.f32 %v907, %v911
          %v913 = vsub.f32 1.0, %v912
          %v914 = vmul.f32 %v911, %v913
          %v915 = vadd.f32 %v911, %v914
          %vm916 = vweird.f32 %v907
          %vm917 = vweird.f32 %v911
          %vm918 = vmor %vm916, %vm917
          %v919 = vsel %vm918, %v911, %v915
          %v920 = vand.u32 2147483647, %v907
          %vm921 = vcmp.eq.f32.partialorder %v920, 8.507059e+37
          %v922 = vand.u32 %v907, 2147483648
          %v923 = vor.u32 1.1754944e-38, %v922
          %v924 = vsel %vm921, %v923, %v919
          %v925 = vmul.f32 %v902, %v924
          %v926 = vrcp.pop %v910
          %v927 = vmul.f32 %v910, %v926
          %v928 = vsub.f32 1.0, %v927
          %v929 = vmul.f32 %v926, %v928
          %v930 = vadd.f32 %v926, %v929
          %vm931 = vweird.f32 %v910
          %vm932 = vweird.f32 %v926
          %vm933 = vmor %vm931, %vm932
          %v934 = vsel %vm933, %v926, %v930
          %v935 = vand.u32 2147483647, %v910
          %vm936 = vcmp.eq.f32.partialorder %v935, 8.507059e+37
          %v937 = vand.u32 %v910, 2147483648
          %v938 = vor.u32 1.1754944e-38, %v937
          %v939 = vsel %vm936, %v938, %v934
          %v940 = vmul.f32 %v904, %v939
          %v941 = vpack.c.bf16 %v940, %v925
          %v943 = vsel %vm892, %v941, 0
          %945 = vmatpush.bf16.msra.mxu0 0
          %946 = vmatpush.bf16.msra.mxu0 0
          %947 = vmatpush.bf16.msra.mxu0 0
          %948 = vmatpush.bf16.msra.mxu0 0
          %949 = vmatpush.bf16.msra.mxu0 0
          %950 = vmatpush.bf16.msra.mxu0 0
          %951 = vmatpush.bf16.msra.mxu0 0
          %952 = vmatpush.bf16.msra.mxu0 %v861
          %953 = vmatmul.bf16.gmra.mxu0 %v943
          %v954 = vpop.f32.mrf.mxu0
          %v955 = vadd.f32 0.0, %v954
          %v956 = vpop.f32.mrf.mxu0
          %v957 = vadd.f32 0.0, %v956
          %958 = vdwg.mxu0
          %959 = vrot.lane.b32.xlu0 %v860, 120
          %v960 = vpop.permute.xlu0 %959
          %961 = vrot.lane.b32.xlu0 %v860, 88
          %v962 = vpop.permute.xlu0 %961
          %v964 = vsel %vm742, %v960, 0
          %v967 = vsel %vm742, %v962, 0
          %969 = vmatpush.bf16.xpose.msra.mxu0 0
          %970 = vmatpush.bf16.xpose.msra.mxu0 0
          %971 = vmatpush.bf16.xpose.msra.mxu0 0
          %972 = vmatpush.bf16.xpose.msra.mxu0 0
          %973 = vmatpush.bf16.xpose.msra.mxu0 0
          %974 = vmatpush.bf16.xpose.msra.mxu0 0
          %975 = vmatpush.bf16.xpose.msra.mxu0 0
          %976 = vmatpush.bf16.xpose.msra.mxu0 %v967
          %977 = vmatmul.bf16.gmra.mxu0 %v964
          %v978 = vpop.f32.mrf.mxu0
          %v979 = vadd.f32 0.0, %v978
          %v980 = vpop.f32.mrf.mxu0
          %v981 = vadd.f32 0.0, %v980
          %982 = vdwg.mxu0
          %v983 = vmul.f32 %v979, 0.35355338
          %v984 = vmul.f32 %v981, 0.35355338
          %v985 = vadd.f32 %v983, %v888
          %v986 = vadd.f32 %v984, %v888
          %v987 = vsel %vm892, %v985, -inf
          %988 = vmax.xlane.f32.xlu0 %v987
          %v989 = vpop.xlane.xlu0 %988
          %v990 = vsel %vm892, %v986, -inf
          %991 = vmax.xlane.f32.xlu0 %v990
          %v992 = vpop.xlane.xlu0 %991
          %v993 = vsub.f32 %v985, %v989
          %v994 = vsub.f32 %v986, %v992
          %v995 = vmul.f32 %v993, 1.442695
          %v996 = vpow.pop %v995
          %v997 = vmul.f32 %v994, 1.442695
          %v998 = vpow.pop %v997
          %v999 = vsel %vm892, %v996, 0.0
          %1000 = vadd.xlane.f32.xlu0 %v999
          %v1001 = vpop.xlane.xlu0 %1000
          %v1002 = vsel %vm892, %v998, 0.0
          %1003 = vadd.xlane.f32.xlu0 %v1002
          %v1004 = vpop.xlane.xlu0 %1003
          %v1005 = vrcp.pop %v1001
          %v1006 = vmul.f32 %v1001, %v1005
          %v1007 = vsub.f32 1.0, %v1006
          %v1008 = vmul.f32 %v1005, %v1007
          %v1009 = vadd.f32 %v1005, %v1008
          %vm1010 = vweird.f32 %v1001
          %vm1011 = vweird.f32 %v1005
          %vm1012 = vmor %vm1010, %vm1011
          %v1013 = vsel %vm1012, %v1005, %v1009
          %v1014 = vand.u32 2147483647, %v1001
          %vm1015 = vcmp.eq.f32.partialorder %v1014, 8.507059e+37
          %v1016 = vand.u32 %v1001, 2147483648
          %v1017 = vor.u32 1.1754944e-38, %v1016
          %v1018 = vsel %vm1015, %v1017, %v1013
          %v1019 = vmul.f32 %v996, %v1018
          %v1020 = vrcp.pop %v1004
          %v1021 = vmul.f32 %v1004, %v1020
          %v1022 = vsub.f32 1.0, %v1021
          %v1023 = vmul.f32 %v1020, %v1022
          %v1024 = vadd.f32 %v1020, %v1023
          %vm1025 = vweird.f32 %v1004
          %vm1026 = vweird.f32 %v1020
          %vm1027 = vmor %vm1025, %vm1026
          %v1028 = vsel %vm1027, %v1020, %v1024
          %v1029 = vand.u32 2147483647, %v1004
          %vm1030 = vcmp.eq.f32.partialorder %v1029, 8.507059e+37
          %v1031 = vand.u32 %v1004, 2147483648
          %v1032 = vor.u32 1.1754944e-38, %v1031
          %v1033 = vsel %vm1030, %v1032, %v1028
          %v1034 = vmul.f32 %v998, %v1033
          %v1035 = vpack.c.bf16 %v1034, %v1019
          %1037 = vrot.lane.b32.xlu0 %v861, 120
          %v1038 = vpop.permute.xlu0 %1037
          %v1041 = vsel %vm892, %v1035, 0
          %1043 = vmatpush.bf16.msra.mxu0 0
          %1044 = vmatpush.bf16.msra.mxu0 0
          %1045 = vmatpush.bf16.msra.mxu0 0
          %1046 = vmatpush.bf16.msra.mxu0 0
          %1047 = vmatpush.bf16.msra.mxu0 0
          %1048 = vmatpush.bf16.msra.mxu0 0
          %1049 = vmatpush.bf16.msra.mxu0 0
          %1050 = vmatpush.bf16.msra.mxu0 %v1038
          %1051 = vmatmul.bf16.gmra.mxu0 %v1041
          %v1052 = vpop.f32.mrf.mxu0
          %v1053 = vadd.f32 0.0, %v1052
          %v1054 = vpop.f32.mrf.mxu0
          %v1055 = vadd.f32 0.0, %v1054
          %1056 = vdwg.mxu0
          %1057 = vrot.lane.b32.xlu0 %v860, 112
          %v1058 = vpop.permute.xlu0 %1057
          %1059 = vrot.lane.b32.xlu0 %v860, 80
          %v1060 = vpop.permute.xlu0 %1059
          %v1062 = vsel %vm742, %v1058, 0
          %v1065 = vsel %vm742, %v1060, 0
          %1067 = vmatpush.bf16.xpose.msra.mxu0 0
          %1068 = vmatpush.bf16.xpose.msra.mxu0 0
          %1069 = vmatpush.bf16.xpose.msra.mxu0 0
          %1070 = vmatpush.bf16.xpose.msra.mxu0 0
          %1071 = vmatpush.bf16.xpose.msra.mxu0 0
          %1072 = vmatpush.bf16.xpose.msra.mxu0 0
          %1073 = vmatpush.bf16.xpose.msra.mxu0 0
          %1074 = vmatpush.bf16.xpose.msra.mxu0 %v1065
          %1075 = vmatmul.bf16.gmra.mxu0 %v1062
          %v1076 = vpop.f32.mrf.mxu0
          %v1077 = vadd.f32 0.0, %v1076
          %v1078 = vpop.f32.mrf.mxu0
          %v1079 = vadd.f32 0.0, %v1078
          %1080 = vdwg.mxu0
          %v1081 = vmul.f32 %v1077, 0.35355338
          %v1082 = vmul.f32 %v1079, 0.35355338
          %v1083 = vadd.f32 %v1081, %v888
          %v1084 = vadd.f32 %v1082, %v888
          %v1085 = vsel %vm892, %v1083, -inf
          %1086 = vmax.xlane.f32.xlu0 %v1085
          %v1087 = vpop.xlane.xlu0 %1086
          %v1088 = vsel %vm892, %v1084, -inf
          %1089 = vmax.xlane.f32.xlu0 %v1088
          %v1090 = vpop.xlane.xlu0 %1089
          %v1091 = vsub.f32 %v1083, %v1087
          %v1092 = vsub.f32 %v1084, %v1090
          %v1093 = vmul.f32 %v1091, 1.442695
          %v1094 = vpow.pop %v1093
          %v1095 = vmul.f32 %v1092, 1.442695
          %v1096 = vpow.pop %v1095
          %v1097 = vsel %vm892, %v1094, 0.0
          %1098 = vadd.xlane.f32.xlu0 %v1097
          %v1099 = vpop.xlane.xlu0 %1098
          %v1100 = vsel %vm892, %v1096, 0.0
          %1101 = vadd.xlane.f32.xlu0 %v1100
          %v1102 = vpop.xlane.xlu0 %1101
          %v1103 = vrcp.pop %v1099
          %v1104 = vmul.f32 %v1099, %v1103
          %v1105 = vsub.f32 1.0, %v1104
          %v1106 = vmul.f32 %v1103, %v1105
          %v1107 = vadd.f32 %v1103, %v1106
          %vm1108 = vweird.f32 %v1099
          %vm1109 = vweird.f32 %v1103
          %vm1110 = vmor %vm1108, %vm1109
          %v1111 = vsel %vm1110, %v1103, %v1107
          %v1112 = vand.u32 2147483647, %v1099
          %vm1113 = vcmp.eq.f32.partialorder %v1112, 8.507059e+37
          %v1114 = vand.u32 %v1099, 2147483648
          %v1115 = vor.u32 1.1754944e-38, %v1114
          %v1116 = vsel %vm1113, %v1115, %v1111
          %v1117 = vmul.f32 %v1094, %v1116
          %v1118 = vrcp.pop %v1102
          %v1119 = vmul.f32 %v1102, %v1118
          %v1120 = vsub.f32 1.0, %v1119
          %v1121 = vmul.f32 %v1118, %v1120
          %v1122 = vadd.f32 %v1118, %v1121
          %vm1123 = vweird.f32 %v1102
          %vm1124 = vweird.f32 %v1118
          %vm1125 = vmor %vm1123, %vm1124
          %v1126 = vsel %vm1125, %v1118, %v1122
          %v1127 = vand.u32 2147483647, %v1102
          %vm1128 = vcmp.eq.f32.partialorder %v1127, 8.507059e+37
          %v1129 = vand.u32 %v1102, 2147483648
          %v1130 = vor.u32 1.1754944e-38, %v1129
          %v1131 = vsel %vm1128, %v1130, %v1126
          %v1132 = vmul.f32 %v1096, %v1131
          %v1133 = vpack.c.bf16 %v1132, %v1117
          %1134 = vrot.lane.b32.xlu0 %v861, 112
          %v1135 = vpop.permute.xlu0 %1134
          %v1138 = vsel %vm892, %v1133, 0
          %1140 = vmatpush.bf16.msra.mxu0 0
          %1141 = vmatpush.bf16.msra.mxu0 0
          %1142 = vmatpush.bf16.msra.mxu0 0
          %1143 = vmatpush.bf16.msra.mxu0 0
          %1144 = vmatpush.bf16.msra.mxu0 0
          %1145 = vmatpush.bf16.msra.mxu0 0
          %1146 = vmatpush.bf16.msra.mxu0 0
          %1147 = vmatpush.bf16.msra.mxu0 %v1135
          %1148 = vmatmul.bf16.gmra.mxu0 %v1138
          %v1149 = vpop.f32.mrf.mxu0
          %v1150 = vadd.f32 0.0, %v1149
          %v1151 = vpop.f32.mrf.mxu0
          %v1152 = vadd.f32 0.0, %v1151
          %1153 = vdwg.mxu0
          %1154 = vrot.lane.b32.xlu0 %v860, 104
          %v1155 = vpop.permute.xlu0 %1154
          %1156 = vrot.lane.b32.xlu0 %v860, 72
          %v1157 = vpop.permute.xlu0 %1156
          %v1159 = vsel %vm742, %v1155, 0
          %v1162 = vsel %vm742, %v1157, 0
          %1164 = vmatpush.bf16.xpose.msra.mxu0 0
          %1165 = vmatpush.bf16.xpose.msra.mxu0 0
          %1166 = vmatpush.bf16.xpose.msra.mxu0 0
          %1167 = vmatpush.bf16.xpose.msra.mxu0 0
          %1168 = vmatpush.bf16.xpose.msra.mxu0 0
          %1169 = vmatpush.bf16.xpose.msra.mxu0 0
          %1170 = vmatpush.bf16.xpose.msra.mxu0 0
          %1171 = vmatpush.bf16.xpose.msra.mxu0 %v1162
          %1172 = vmatmul.bf16.gmra.mxu0 %v1159
          %v1173 = vpop.f32.mrf.mxu0
          %v1174 = vadd.f32 0.0, %v1173
          %v1175 = vpop.f32.mrf.mxu0
          %v1176 = vadd.f32 0.0, %v1175
          %1177 = vdwg.mxu0
          %v1178 = vmul.f32 %v1174, 0.35355338
          %v1179 = vmul.f32 %v1176, 0.35355338
          %v1180 = vadd.f32 %v1178, %v888
          %v1181 = vadd.f32 %v1179, %v888
          %v1182 = vsel %vm892, %v1180, -inf
          %1183 = vmax.xlane.f32.xlu0 %v1182
          %v1184 = vpop.xlane.xlu0 %1183
          %v1185 = vsel %vm892, %v1181, -inf
          %1186 = vmax.xlane.f32.xlu0 %v1185
          %v1187 = vpop.xlane.xlu0 %1186
          %v1188 = vsub.f32 %v1180, %v1184
          %v1189 = vsub.f32 %v1181, %v1187
          %v1190 = vmul.f32 %v1188, 1.442695
          %v1191 = vpow.pop %v1190
          %v1192 = vmul.f32 %v1189, 1.442695
          %v1193 = vpow.pop %v1192
          %v1194 = vsel %vm892, %v1191, 0.0
          %1195 = vadd.xlane.f32.xlu0 %v1194
          %v1196 = vpop.xlane.xlu0 %1195
          %v1197 = vsel %vm892, %v1193, 0.0
          %1198 = vadd.xlane.f32.xlu0 %v1197
          %v1199 = vpop.xlane.xlu0 %1198
          %v1200 = vrcp.pop %v1196
          %v1201 = vmul.f32 %v1196, %v1200
          %v1202 = vsub.f32 1.0, %v1201
          %v1203 = vmul.f32 %v1200, %v1202
          %v1204 = vadd.f32 %v1200, %v1203
          %vm1205 = vweird.f32 %v1196
          %vm1206 = vweird.f32 %v1200
          %vm1207 = vmor %vm1205, %vm1206
          %v1208 = vsel %vm1207, %v1200, %v1204
          %v1209 = vand.u32 2147483647, %v1196
          %vm1210 = vcmp.eq.f32.partialorder %v1209, 8.507059e+37
          %v1211 = vand.u32 %v1196, 2147483648
          %v1212 = vor.u32 1.1754944e-38, %v1211
          %v1213 = vsel %vm1210, %v1212, %v1208
          %v1214 = vmul.f32 %v1191, %v1213
          %v1215 = vrcp.pop %v1199
          %v1216 = vmul.f32 %v1199, %v1215
          %v1217 = vsub.f32 1.0, %v1216
          %v1218 = vmul.f32 %v1215, %v1217
          %v1219 = vadd.f32 %v1215, %v1218
          %vm1220 = vweird.f32 %v1199
          %vm1221 = vweird.f32 %v1215
          %vm1222 = vmor %vm1220, %vm1221
          %v1223 = vsel %vm1222, %v1215, %v1219
          %v1224 = vand.u32 2147483647, %v1199
          %vm1225 = vcmp.eq.f32.partialorder %v1224, 8.507059e+37
          %v1226 = vand.u32 %v1199, 2147483648
          %v1227 = vor.u32 1.1754944e-38, %v1226
          %v1228 = vsel %vm1225, %v1227, %v1223
          %v1229 = vmul.f32 %v1193, %v1228
          %v1230 = vpack.c.bf16 %v1229, %v1214
          %1231 = vrot.lane.b32.xlu0 %v861, 104
          %v1232 = vpop.permute.xlu0 %1231
          %v1235 = vsel %vm892, %v1230, 0
          %1237 = vmatpush.bf16.msra.mxu0 0
          %1238 = vmatpush.bf16.msra.mxu0 0
          %1239 = vmatpush.bf16.msra.mxu0 0
          %1240 = vmatpush.bf16.msra.mxu0 0
          %1241 = vmatpush.bf16.msra.mxu0 0
          %1242 = vmatpush.bf16.msra.mxu0 0
          %1243 = vmatpush.bf16.msra.mxu0 0
          %1244 = vmatpush.bf16.msra.mxu0 %v1232
          %1245 = vmatmul.bf16.gmra.mxu0 %v1235
          %v1246 = vpop.f32.mrf.mxu0
          %v1247 = vadd.f32 0.0, %v1246
          %v1248 = vpop.f32.mrf.mxu0
          %v1249 = vadd.f32 0.0, %v1248
          %1250 = vdwg.mxu0
          %1253 = vrot.lane.b32.xlu0 %v1053, 8
          %v1254 = vpop.permute.xlu0 %1253
          %1255 = vrot.lane.b32.xlu0 %v1055, 8
          %v1256 = vpop.permute.xlu0 %1255
          %1261 = vrot.lane.b32.xlu0 %v1150, 16
          %v1262 = vpop.permute.xlu0 %1261
          %1263 = vrot.lane.b32.xlu0 %v1152, 16
          %v1264 = vpop.permute.xlu0 %1263
          %1269 = vrot.lane.b32.xlu0 %v1247, 24
          %v1270 = vpop.permute.xlu0 %1269
          %1271 = vrot.lane.b32.xlu0 %v1249, 24
          %v1272 = vpop.permute.xlu0 %1271
          %v1275 = vsel %vm742, %v955, %v1254
          %v1276 = vsel %vm742, %v957, %v1256
          %v1277 = vsel %vm892, %v1275, %v1262
          %v1278 = vsel %vm892, %v1276, %v1264
          %vm1279 = vcmask 195584
          %v1280 = vsel %vm1279, %v1277, %v1270
          %v1281 = vsel %vm1279, %v1278, %v1272
          %v1282 = vpack.c.bf16 %v1281, %v1280
          %s1283 = smul.addr %s778, 4
          %s1284 = scalar_lea.vmem %s9, %s1283
          %v1285 = vld [vmem:[%s1284] sm:$0xf]
          %v1286 = vld [vmem:[%s1284 + $0x4] sm:$0xf]
          %v1287 = vld [vmem:[%s1284 + $0x8] sm:$0xf]
          %v1288 = vld [vmem:[%s1284 + $0xc] sm:$0xf]
          %s1289 = scalar_lea.vmem %s10, %s768
          %v1290 = vld [vmem:[%s1289] sm:$0x1]
          %v1292 = vperm.slane %v1290, 0
          %v1298 = vunpack.c.l.b16 %v1285
          %v1299 = vunpack.c.l.b16 %v1286
          %v1300 = vunpack.c.l.b16 %v1287
          %v1301 = vunpack.c.l.b16 %v1288
          %v1302 = vpack.c.b16 %v1299, %v1298
          %v1303 = vpack.c.b16 %v1301, %v1300
          %v1307 = vsel %vm764, %v1282, 0
          %1309 = vmatpush.bf16.msra.mxu0 0
          %1310 = vmatpush.bf16.msra.mxu0 0
          %1311 = vmatpush.bf16.msra.mxu0 0
          %1312 = vmatpush.bf16.msra.mxu0 0
          %1313 = vmatpush.bf16.msra.mxu0 0
          %1314 = vmatpush.bf16.msra.mxu0 0
          %1315 = vmatpush.bf16.msra.mxu0 %v1303
          %1316 = vmatpush.bf16.msra.mxu0 %v1302
          %1317 = vmatmul.bf16.gmra.mxu0 %v1307
          %v1318 = vpop.f32.mrf.mxu0
          %v1319 = vadd.f32 %v1292, %v1318
          %v1320 = vpop.f32.mrf.mxu0
          %v1321 = vadd.f32 %v1292, %v1320
          %1322 = vdwg.mxu0
          %v1323 = vadd.f32 %v773, %v1319
          %v1324 = vadd.f32 %v774, %v1321
          %s1325 = scalar_lea.vmem %s11, %s768
          %v1326 = vld [vmem:[%s1325] sm:$0x1]
          %s1327 = scalar_lea.vmem %s12, %s768
          %v1328 = vld [vmem:[%s1327] sm:$0x1]
          %v1329 = vsel %vm764, %v1323, 0.0
          %1330 = vadd.xlane.f32.xlu0 %v1329
          %v1331 = vpop.xlane.xlu0 %1330
          %v1332 = vsel %vm764, %v1324, 0.0
          %1333 = vadd.xlane.f32.xlu0 %v1332
          %v1334 = vpop.xlane.xlu0 %1333
          %v1335 = vrcp.pop 32.0
          %v1336 = vmul.f32 32.0, %v1335
          %v1337 = vsub.f32 1.0, %v1336
          %v1338 = vmul.f32 %v1335, %v1337
          %v1339 = vadd.f32 %v1335, %v1338
          %vm1340 = vweird.f32 %v1335
          %v1341 = vsel %vm1340, %v1335, %v1339
          %v1342 = vmul.f32 %v1331, %v1341
          %v1343 = vmul.f32 %v1334, %v1341
          %v1344 = vsub.f32 %v1323, %v1342
          %v1345 = vsub.f32 %v1324, %v1343
          %v1346 = vmul.f32 %v1344, %v1344
          %v1347 = vmul.f32 %v1345, %v1345
          %v1348 = vsel %vm764, %v1346, 0.0
          %1349 = vadd.xlane.f32.xlu0 %v1348
          %v1350 = vpop.xlane.xlu0 %1349
          %v1351 = vsel %vm764, %v1347, 0.0
          %1352 = vadd.xlane.f32.xlu0 %v1351
          %v1353 = vpop.xlane.xlu0 %1352
          %v1354 = vmul.f32 %v1350, %v1341
          %v1355 = vmul.f32 %v1353, %v1341
          %v1356 = vadd.f32 %v1354, 1e-05
          %v1357 = vadd.f32 %v1355, 1e-05
          %v1358 = vrsqrt.pop %v1356
          %v1359 = vmul.f32 %v1358, %v1356
          %v1360 = vmul.f32 %v1359, %v1358
          %v1361 = vmul.f32 0.5, %v1360
          %v1362 = vsub.f32 1.5, %v1361
          %v1363 = vmul.f32 %v1358, %v1362
          %vm1364 = vweird.f32 %v1356
          %vm1365 = vweird.f32 %v1358
          %vm1366 = vmor %vm1364, %vm1365
          %v1367 = vsel %vm1366, %v1358, %v1363
          %v1368 = vrsqrt.pop %v1357
          %v1369 = vmul.f32 %v1368, %v1357
          %v1370 = vmul.f32 %v1369, %v1368
          %v1371 = vmul.f32 0.5, %v1370
          %v1372 = vsub.f32 1.5, %v1371
          %v1373 = vmul.f32 %v1368, %v1372
          %vm1374 = vweird.f32 %v1357
          %vm1375 = vweird.f32 %v1368
          %vm1376 = vmor %vm1374, %vm1375
          %v1377 = vsel %vm1376, %v1368, %v1373
          %v1378 = vmul.f32 %v1344, %v1367
          %v1379 = vmul.f32 %v1345, %v1377
          %v1381 = vperm.slane %v1326, 0
          %v1383 = vmul.f32 %v1378, %v1381
          %v1384 = vmul.f32 %v1379, %v1381
          %v1386 = vperm.slane %v1328, 0
          %v1388 = vadd.f32 %v1383, %v1386
          %v1389 = vadd.f32 %v1384, %v1386
          %v1390 = vpack.c.bf16 %v1389, %v1388
          %s1391 = smul.addr %s778, 4
          %s1392 = scalar_lea.vmem %s13, %s1391
          %v1393 = vld [vmem:[%s1392] sm:$0xf]
          %v1394 = vld [vmem:[%s1392 + $0x4] sm:$0xf]
          %v1395 = vld [vmem:[%s1392 + $0x8] sm:$0xf]
          %v1396 = vld [vmem:[%s1392 + $0xc] sm:$0xf]
          %s1397 = scalar_lea.vmem %s14, %s768
          %v1398 = vld [vmem:[%s1397] sm:$0x1]
          %v1400 = vperm.slane %v1398, 0
          %v1406 = vunpack.c.l.b16 %v1393
          %v1407 = vunpack.c.l.b16 %v1394
          %v1408 = vunpack.c.l.b16 %v1395
          %v1409 = vunpack.c.l.b16 %v1396
          %v1410 = vpack.c.b16 %v1407, %v1406
          %v1411 = vpack.c.b16 %v1409, %v1408
          %v1415 = vsel %vm764, %v1390, 0
          %1417 = vmatpush.bf16.msra.mxu0 0
          %1418 = vmatpush.bf16.msra.mxu0 0
          %1419 = vmatpush.bf16.msra.mxu0 0
          %1420 = vmatpush.bf16.msra.mxu0 0
          %1421 = vmatpush.bf16.msra.mxu0 0
          %1422 = vmatpush.bf16.msra.mxu0 0
          %1423 = vmatpush.bf16.msra.mxu0 %v1411
          %1424 = vmatpush.bf16.msra.mxu0 %v1410
          %1425 = vmatmul.bf16.gmra.mxu0 %v1415
          %v1426 = vpop.f32.mrf.mxu0
          %v1427 = vadd.f32 %v1400, %v1426
          %v1428 = vpop.f32.mrf.mxu0
          %v1429 = vadd.f32 %v1400, %v1428
          %1430 = vdwg.mxu0
          %v1431 = vmax.f32 %v1427, 0.0
          %v1432 = vmax.f32 %v1429, 0.0
          %v1433 = vpack.c.bf16 %v1432, %v1431
          %s1434 = smul.addr %s778, 4
          %s1435 = scalar_lea.vmem %s15, %s1434
          %v1436 = vld [vmem:[%s1435] sm:$0xf]
          %v1437 = vld [vmem:[%s1435 + $0x4] sm:$0xf]
          %v1438 = vld [vmem:[%s1435 + $0x8] sm:$0xf]
          %v1439 = vld [vmem:[%s1435 + $0xc] sm:$0xf]
          %s1440 = scalar_lea.vmem %s16, %s768
          %v1441 = vld [vmem:[%s1440] sm:$0x1]
          %v1443 = vperm.slane %v1441, 0
          %v1449 = vunpack.c.l.b16 %v1436
          %v1450 = vunpack.c.l.b16 %v1437
          %v1451 = vunpack.c.l.b16 %v1438
          %v1452 = vunpack.c.l.b16 %v1439
          %v1453 = vpack.c.b16 %v1450, %v1449
          %v1454 = vpack.c.b16 %v1452, %v1451
          %v1458 = vsel %vm764, %v1433, 0
          %1460 = vmatpush.bf16.msra.mxu0 0
          %1461 = vmatpush.bf16.msra.mxu0 0
          %1462 = vmatpush.bf16.msra.mxu0 0
          %1463 = vmatpush.bf16.msra.mxu0 0
          %1464 = vmatpush.bf16.msra.mxu0 0
          %1465 = vmatpush.bf16.msra.mxu0 0
          %1466 = vmatpush.bf16.msra.mxu0 %v1454
          %1467 = vmatpush.bf16.msra.mxu0 %v1453
          %1468 = vmatmul.bf16.gmra.mxu0 %v1458
          %v1469 = vpop.f32.mrf.mxu0
          %v1470 = vadd.f32 %v1443, %v1469
          %v1471 = vpop.f32.mrf.mxu0
          %v1472 = vadd.f32 %v1443, %v1471
          %1473 = vdwg.mxu0
          %v1474 = vadd.f32 %v1388, %v1470
          %v1475 = vadd.f32 %v1389, %v1472
          %s1476 = scalar_lea.vmem %s17, %s768
          %v1477 = vld [vmem:[%s1476] sm:$0x1]
          %s1478 = scalar_lea.vmem %s18, %s768
          %v1479 = vld [vmem:[%s1478] sm:$0x1]
          %v1480 = vsel %vm764, %v1474, 0.0
          %1481 = vadd.xlane.f32.xlu0 %v1480
          %v1482 = vpop.xlane.xlu0 %1481
          %v1483 = vsel %vm764, %v1475, 0.0
          %1484 = vadd.xlane.f32.xlu0 %v1483
          %v1485 = vpop.xlane.xlu0 %1484
          %v1486 = vmul.f32 %v1482, %v1341
          %v1487 = vmul.f32 %v1485, %v1341
          %v1488 = vsub.f32 %v1474, %v1486
          %v1489 = vsub.f32 %v1475, %v1487
          %v1490 = vmul.f32 %v1488, %v1488
          %v1491 = vmul.f32 %v1489, %v1489
          %v1492 = vsel %vm764, %v1490, 0.0
          %1493 = vadd.xlane.f32.xlu0 %v1492
          %v1494 = vpop.xlane.xlu0 %1493
          %v1495 = vsel %vm764, %v1491, 0.0
          %1496 = vadd.xlane.f32.xlu0 %v1495
          %v1497 = vpop.xlane.xlu0 %1496
          %v1498 = vmul.f32 %v1494, %v1341
          %v1499 = vmul.f32 %v1497, %v1341
          %v1500 = vadd.f32 %v1498, 1e-05
          %v1501 = vadd.f32 %v1499, 1e-05
          %v1502 = vrsqrt.pop %v1500
          %v1503 = vmul.f32 %v1502, %v1500
          %v1504 = vmul.f32 %v1503, %v1502
          %v1505 = vmul.f32 0.5, %v1504
          %v1506 = vsub.f32 1.5, %v1505
          %v1507 = vmul.f32 %v1502, %v1506
          %vm1508 = vweird.f32 %v1500
          %vm1509 = vweird.f32 %v1502
          %vm1510 = vmor %vm1508, %vm1509
          %v1511 = vsel %vm1510, %v1502, %v1507
          %v1512 = vrsqrt.pop %v1501
          %v1513 = vmul.f32 %v1512, %v1501
          %v1514 = vmul.f32 %v1513, %v1512
          %v1515 = vmul.f32 0.5, %v1514
          %v1516 = vsub.f32 1.5, %v1515
          %v1517 = vmul.f32 %v1512, %v1516
          %vm1518 = vweird.f32 %v1501
          %vm1519 = vweird.f32 %v1512
          %vm1520 = vmor %vm1518, %vm1519
          %v1521 = vsel %vm1520, %v1512, %v1517
          %v1522 = vmul.f32 %v1488, %v1511
          %v1523 = vmul.f32 %v1489, %v1521
          %v1525 = vperm.slane %v1477, 0
          %v1527 = vmul.f32 %v1522, %v1525
          %v1528 = vmul.f32 %v1523, %v1525
          %v1530 = vperm.slane %v1479, 0
          %v1532 = vadd.f32 %v1527, %v1530
          %v1533 = vadd.f32 %v1528, %v1530
          %1534 = vst.msk [vmem:[#allocation2] sm:$0xff] %vm764, %v1532
          %1535 = vst.msk [vmem:[#allocation2 + $0x8] sm:$0xff] %vm764, %v1533
        $region109: #{tpu_custom_call.1} parent=103 // loop_footer
          %s772 = sadd.s32 1, %s768
        $region110: #{tpu_custom_call.1} parent=103 // loop_footer_branch
          %767 = sbr.rel target = $region106
        $region111: #{tpu_custom_call.1} parent=103 // loop_exit
          _
        %v1536 = vld [vmem:[#allocation2] sm:$0xff]
        %v1537 = vld [vmem:[#allocation2 + $0x8] sm:$0xff]
        %vm1538 = vcmask 253952
        %1539 = vst.msk [vmem:[%s702] sm:$0x1] %vm1538, %v1536
        %v1540 = vld [vmem:[%s19] sm:$0xff]
        %v1541 = vld [vmem:[%s19 + $0x8] sm:$0xff]
        %v1542 = vld [vmem:[%s19 + $0x10] sm:$0xff]
        %v1543 = vld [vmem:[%s19 + $0x18] sm:$0xff]
        %v1544 = vld [vmem:[%s20] sm:$0x1]
        %v1546 = vperm.slane %v1544, 0
        %v1549 = vsel %vm764, %v1536, 0
        %v1552 = vsel %vm764, %v1537, 0
        %1554 = vmatpush.msra.mxu0 0.0
        %1555 = vmatpush.msra.mxu0 0.0
        %1556 = vmatpush.msra.mxu0 0.0
        %1557 = vmatpush.msra.mxu0 0.0
        %1558 = vmatpush.msra.mxu0 0.0
        %1559 = vmatpush.msra.mxu0 0.0
        %1560 = vmatpush.msra.mxu0 0.0
        %1561 = vmatpush.msra.mxu0 0.0
        %1562 = vmatpush.msra.mxu0 0.0
        %1563 = vmatpush.msra.mxu0 0.0
        %1564 = vmatpush.msra.mxu0 0.0
        %1565 = vmatpush.msra.mxu0 0.0
        %1566 = vmatpush.msra.mxu0 %v1543
        %1567 = vmatpush.msra.mxu0 %v1542
        %1568 = vmatpush.msra.mxu0 %v1541
        %1569 = vmatpush.msra.mxu0 %v1540
        %1570 = vmatmul.f32.gmra.mxu0 %v1549
        %v1571 = vpop.f32.mrf.mxu0
        %v1572 = vadd.f32 %v1546, %v1571
        %1573 = vmatmul.f32.gmra.mxu0 %v1552
        %v1574 = vpop.f32.mrf.mxu0
        %v1575 = vadd.f32 %v1546, %v1574
        %1576 = vdwg.mxu0
        %vm1577 = vcmask 31744
        %1578 = vst.msk [vmem:[%s727] sm:$0xff] %vm1577, %v1572
        %1579 = vst.msk [vmem:[%s727 + $0x8] sm:$0xff] %vm1577, %v1575
        %s1580 = sand.u32 %s501, 1
        %s1581 = scalar_lea.sflag [#allocation4], %s1580
        %s1582 = sand.u32 %s501, 1
        %s1583 = scalar_lea.vmem [#allocation3], %s1582
        %p1584 = scmp.lt.s32.totalorder %s37, 11
        %s1585 = scalar_select %p1584, %s37, 11
        %s1586 = smul.addr %s1585, 2
        %s1587 = smul.addr %s1586, 8
        %s1588 = scalar_lea.vmem %s22, %s1587
        // Predicated region
        $region112: #{tpu_custom_call.1} parent=103 // pred_check
          %p1589 = pneg %p511
        $region113: #{tpu_custom_call.1} parent=103 // pred_check_branch
          %1591 = sbr.rel (%p1589) target = $region115
        $region114: #{tpu_custom_call.1} parent=103 // pred_region
          %1593 = vsyncadd %s1581, 0
          %s1594 = scalar_lea.hbm %s21, %s37
          %s1596 = sshll.u32 %s1583, 4
          %s1597 = int_to_ptr.vmem [resolvable:$true] %s1596
          %s1598 = sshll.u32 %s1594, 4
          %s1599 = int_to_ptr.hbm [resolvable:$true] %s1598
          %1601 = dma.vmem_to_hbm [thread:$0]  %s1597, 16, %s1599, %s1581
        $region115: #{tpu_custom_call.1} parent=103 // pred_fallthru
          _
        // Predicated region
        $region116: #{tpu_custom_call.1} parent=103 // pred_check
          %p1602 = pneg %p537
        $region117: #{tpu_custom_call.1} parent=103 // pred_check_branch
          %1604 = sbr.rel (%p1602) target = $region119
        $region118: #{tpu_custom_call.1} parent=103 // pred_region
          _
        $region119: #{tpu_custom_call.1} parent=103 // pred_fallthru
          _
      $region104: #{tpu_custom_call.1} parent=5 // pred_fallthru
        _
      %p1605 = scmp.le.s32.totalorder 2, %s32
      // Predicated region
      $region120: #{tpu_custom_call.1} parent=5 // pred_check
        %p1606 = pneg %p1605
      $region121: #{tpu_custom_call.1} parent=5 // pred_check_branch
        %1608 = sbr.rel (%p1606) target = $region123
      $region122: #{tpu_custom_call.1} parent=5 // pred_region
        %s1609 = ssub.s32 %s32, 2
        // Predicated region
        $region124: #{tpu_custom_call.1} parent=122 // pred_check
          %p1610 = pneg %p517
        $region125: #{tpu_custom_call.1} parent=122 // pred_check_branch
          %1612 = sbr.rel (%p1610) target = $region127
        $region126: #{tpu_custom_call.1} parent=122 // pred_region
          %s1613 = sand.u32 %s502, 1
          %s1614 = scalar_lea.sflag [#allocation4], %s1613
          %s1615 = sand.u32 %s502, 1
          %s1616 = scalar_lea.vmem [#allocation3], %s1615
          %1618 = dma.done %s1614, 16
        $region127: #{tpu_custom_call.1} parent=122 // pred_fallthru
          _
        // Predicated region
        $region128: #{tpu_custom_call.1} parent=122 // pred_check
          %p1619 = pneg %p543
        $region129: #{tpu_custom_call.1} parent=122 // pred_check_branch
          %1621 = sbr.rel (%p1619) target = $region131
        $region130: #{tpu_custom_call.1} parent=122 // pred_region
          %p1622 = scmp.lt.s32.totalorder %s38, 11
          %s1623 = scalar_select %p1622, %s38, 11
          %s1624 = smul.addr %s1623, 2
          %s1625 = smul.addr %s1624, 8
          %s1626 = scalar_lea.vmem %s22, %s1625
        $region131: #{tpu_custom_call.1} parent=122 // pred_fallthru
          _
      $region123: #{tpu_custom_call.1} parent=5 // pred_fallthru
        _
    $region6: #{tpu_custom_call.1} parent=1 // loop_footer
      %s36 = sadd.s32 1, %s32
    $region7: #{tpu_custom_call.1} parent=1 // loop_footer_branch
      %31 = sbr.rel target = $region3
    $region8: #{tpu_custom_call.1} parent=1 // loop_exit
      _
    %1627 = vsyncpa [#allocation4], 1
    %s1628 = scalar_lea.sflag [#allocation4], 1
    %1629 = vsyncpa %s1628, 1

</llo_original>
